<compile_context>
chip_gen: v7x
topology: tpu7x:2x2x1
jax: 0.10.0
libtpu: 0.0.40
codegen_flags: <defaults>
</compile_context>

<pallas_src>
import functools

import jax
import jax.numpy as jnp
import numpy as np
from jax.experimental import pallas as pl
from jax.experimental.pallas import tpu as pltpu

LANE = 128
SUBLANE = 8


def _round_up(x, m):
    return (x + m - 1) // m * m


# ----------------------------------------------------------------------------
# Fused kernel: conv1d (in-VMEM taps) + ReLU + maxpool + LSTM + fc
# ----------------------------------------------------------------------------
def fused_cnn_lstm_kernel(emb_ref, wc_ref, bc_ref, wih_ref, whh_ref, bl_ref,
                          wfc_ref, bfc_ref, o_ref, xg_ref, *,
                          B, T, pool, K, E, H):
    # emb_ref : (L*B, E)   bf16, time-major rows (l, b)
    # wc_ref  : (K*E, F)   bf16, conv weight, tap-major
    # bc_ref  : (1, F)     f32
    # wih_ref : (F, 4H)    bf16, gate order i,f,o,g
    # whh_ref : (H, 4H)    f32,  gate order i,f,o,g
    # bl_ref  : (1, 4H)    f32   (b_ih + b_hh), gate order i,f,o,g
    # wfc_ref : (H, Cpad)  f32
    # bfc_ref : (1, Cpad)  f32
    # o_ref   : (B, Cpad)  f32
    # xg_ref  : (T*B, 4H)  f32 VMEM scratch (hoisted input projection)
    F = wc_ref.shape[1]
    NP = T * pool            # conv output positions that survive pooling
    NR = NP * B              # conv rows, (l, b) order

    # ---- conv1d: K shifted, sublane-aligned slices of the embeddings; each is
    #      a bf16 matmul with contraction E, accumulated in f32 (im2col-in-VMEM).
    acc = jnp.dot(emb_ref[0:NR, :], wc_ref[0:E, :],
                  preferred_element_type=jnp.float32)
    for k in range(1, K):
        acc += jnp.dot(emb_ref[k * B:(k + NP) * B, :],
                       wc_ref[k * E:(k + 1) * E, :],
                       preferred_element_type=jnp.float32)
    acc = jnp.maximum(acc + bc_ref[...], 0.0)                 # (NP*B, F) f32

    # ---- maxpool1d: tile-aligned sublane slices (pool offsets are contiguous
    #      blocks of B rows inside each group of pool*B rows) --------------------
    acc3 = acc.reshape(T, pool * B, F)
    pooled = acc3[:, 0:B, :]
    for p in range(1, pool):
        pooled = jnp.maximum(pooled, acc3[:, p * B:(p + 1) * B, :])
    pooled = pooled.reshape(T * B, F)                         # rows (t, b)

    # ---- LSTM input projection hoisted out of the recurrence (bf16 matmul) --
    xg_ref[...] = jnp.dot(pooled.astype(jnp.bfloat16), wih_ref[...],
                          preferred_element_type=jnp.float32) + bl_ref[...]

    # ---- serial LSTM recurrence; gate layout (i | f | o | g) -----------------
    whh = whh_ref[...]                                        # hoist VMEM load

    def step(t, carry):
        h, c = carry
        row = pl.multiple_of(t * B, B)
        gates = xg_ref[pl.ds(row, B), :] + jnp.dot(
            h, whh, preferred_element_type=jnp.float32)       # (B, 4H)
        sig = jax.nn.sigmoid(gates[:, 0:3 * H])               # i, f, o at once
        g_g = jnp.tanh(gates[:, 3 * H:4 * H])
        i_g = sig[:, 0:H]
        f_g = sig[:, H:2 * H]
        o_g = sig[:, 2 * H:3 * H]
        c = f_g * c + i_g * g_g
        h = o_g * jnp.tanh(c)
        return h, c

    h0 = jnp.zeros((B, H), jnp.float32)
    c0 = jnp.zeros((B, H), jnp.float32)
    h, _ = jax.lax.fori_loop(0, T, step, (h0, c0), unroll=True)

    # ---- final Linear on last hidden state; one lane-dense full-tile store ---
    o_ref[...] = jnp.dot(h, wfc_ref[...],
                         preferred_element_type=jnp.float32) + bfc_ref[...]


# ----------------------------------------------------------------------------
# Wrapper: embedding gather (plain JAX) + layout prep + fused kernel
# ----------------------------------------------------------------------------
def cnn_lstm_forward(tokens, params, *, K, pool, H):
    emb_table = params["embedding"]          # (V, E)
    conv_w = params["conv_w"]                # (K, E, F)
    conv_b = params["conv_b"]                # (1, F)
    w_ih = params["w_ih"]                    # (F, 4H) gate order i,f,g,o
    w_hh = params["w_hh"]                    # (H, 4H)
    b_lstm = params["b_lstm"]                # (1, 4H)
    fc_w = params["fc_w"]                    # (H, C)
    fc_b = params["fc_b"]                    # (1, C)

    B, L = tokens.shape
    E = emb_table.shape[1]
    F = conv_w.shape[-1]
    C = fc_w.shape[-1]
    L_out = L - K + 1
    T = L_out // pool

    Bp = max(SUBLANE, _round_up(B, SUBLANE))

    # Embedding lookup (data-dependent gather) stays in plain JAX, emitted
    # directly in time-major (L, B, E) order: no HBM transpose, no K-duplicated
    # im2col copy (the conv taps are built from VMEM slices inside the kernel).
    emb = jnp.take(emb_table, tokens.T, axis=0)               # (L, B, E) f32
    if Bp != B:
        emb = jnp.pad(emb, ((0, 0), (0, Bp - B), (0, 0)))
    emb = emb.reshape(L * Bp, E).astype(jnp.bfloat16)         # bf16 MXU operand

    wc2d = conv_w.reshape(K * E, F).astype(jnp.bfloat16)

    # Reorder gate columns (i,f,g,o) -> (i,f,o,g): sigmoid gates contiguous.
    def reorder(x):
        return jnp.concatenate(
            [x[..., :2 * H], x[..., 3 * H:4 * H], x[..., 2 * H:3 * H]], axis=-1)

    wih = reorder(w_ih).astype(jnp.bfloat16)
    whh = reorder(w_hh).astype(jnp.float32)
    bl = reorder(b_lstm).astype(jnp.float32)

    # Lane-pad the classifier so the final store is a full 128-lane write.
    Cp = _round_up(C, LANE)
    wfc = jnp.pad(fc_w, ((0, 0), (0, Cp - C))).astype(jnp.float32)
    bfc = jnp.pad(fc_b, ((0, 0), (0, Cp - C))).astype(jnp.float32)

    NR = T * pool * Bp
    cost = pl.CostEstimate(
        flops=int(2 * (K * NR * E * F + T * Bp * F * 4 * H
                       + T * Bp * H * 4 * H + Bp * H * Cp)),
        transcendentals=int(T * Bp * 5 * H),
        bytes_accessed=int(2 * (emb.size + wc2d.size + wih.size)
                           + 4 * (conv_b.size + whh.size + bl.size
                                  + wfc.size + bfc.size + Bp * Cp)),
    )

    kernel = functools.partial(fused_cnn_lstm_kernel,
                               B=Bp, T=T, pool=pool, K=K, E=E, H=H)
    out = pl.pallas_call(
        kernel,
        out_shape=jax.ShapeDtypeStruct((Bp, Cp), jnp.float32),
        grid=(1,),
        in_specs=[
            pl.BlockSpec((L * Bp, E), lambda i: (0, 0)),
            pl.BlockSpec((K * E, F), lambda i: (0, 0)),
            pl.BlockSpec((1, F), lambda i: (0, 0)),
            pl.BlockSpec((F, 4 * H), lambda i: (0, 0)),
            pl.BlockSpec((H, 4 * H), lambda i: (0, 0)),
            pl.BlockSpec((1, 4 * H), lambda i: (0, 0)),
            pl.BlockSpec((H, Cp), lambda i: (0, 0)),
            pl.BlockSpec((1, Cp), lambda i: (0, 0)),
        ],
        out_specs=pl.BlockSpec((Bp, Cp), lambda i: (0, 0)),
        scratch_shapes=[pltpu.VMEM((T * Bp, 4 * H), jnp.float32)],
        compiler_params=pltpu.CompilerParams(
            dimension_semantics=("arbitrary",),
            vmem_limit_bytes=32 * 1024 * 1024),
        cost_estimate=cost,
    )(emb, wc2d, conv_b, wih, whh, bl, wfc, bfc)

    return out[:B, :C]


# ----------------------------------------------------------------------------
# Pure-JAX reference (mirrors the PyTorch forward), forced to HIGHEST precision
# ----------------------------------------------------------------------------
def reference_forward(tokens, params, *, K, pool, H):
    hp = jax.lax.Precision.HIGHEST
    emb = jnp.take(params["embedding"], tokens, axis=0)               # (B, L, E)
    B, L, E = emb.shape
    F = params["conv_w"].shape[-1]
    L_out = L - K + 1
    acc = jnp.zeros((B, L_out, F), jnp.float32)
    for k in range(K):
        acc = acc + jnp.einsum("ble,ef->blf", emb[:, k:k + L_out, :],
                               params["conv_w"][k], precision=hp)
    acc = jnp.maximum(acc + params["conv_b"], 0.0)
    T = L_out // pool
    pooled = acc[:, :T * pool, :].reshape(B, T, pool, F).max(axis=2)
    h = jnp.zeros((B, H), jnp.float32)
    c = jnp.zeros((B, H), jnp.float32)
    for t in range(T):
        gates = (jnp.dot(pooled[:, t, :], params["w_ih"], precision=hp)
                 + jnp.dot(h, params["w_hh"], precision=hp)
                 + params["b_lstm"])
        i_g = jax.nn.sigmoid(gates[:, 0 * H:1 * H])
        f_g = jax.nn.sigmoid(gates[:, 1 * H:2 * H])
        g_g = jnp.tanh(gates[:, 2 * H:3 * H])
        o_g = jax.nn.sigmoid(gates[:, 3 * H:4 * H])
        c = f_g * c + i_g * g_g
        h = o_g * jnp.tanh(c)
    return jnp.dot(h, params["fc_w"], precision=hp) + params["fc_b"]


if __name__ == "__main__":
    # Small, forward-consistent shapes.
    B = 2            # batch
    L = 16           # sequence length (tokens)
    VOCAB = 100      # max_features (small synthetic vocab)
    E = 32           # embedding_size
    F = 16           # num_filters
    K = 5            # kernel_size
    POOL = 4         # pool_size
    H = 32           # cell_size
    C = 2            # num_classes

    key = jax.random.PRNGKey(0)
    keys = jax.random.split(key, 9)

    params = {
        "embedding": 0.1 * jax.random.normal(keys[0], (VOCAB, E), jnp.float32),
        # Conv1d weight stored as (K, E, F)  (PyTorch is (F, E, K), transposed)
        "conv_w": 0.1 * jax.random.normal(keys[1], (K, E, F), jnp.float32),
        "conv_b": 0.1 * jax.random.normal(keys[2], (1, F), jnp.float32),
        # LSTM weights stored transposed: (F, 4H), (H, 4H); gate order i,f,g,o
        "w_ih": 0.1 * jax.random.normal(keys[3], (F, 4 * H), jnp.float32),
        "w_hh": 0.1 * jax.random.normal(keys[4], (H, 4 * H), jnp.float32),
        # combined b_ih + b_hh
        "b_lstm": 0.1 * jax.random.normal(keys[5], (1, 4 * H), jnp.float32),
        # Linear: (H, C) (PyTorch is (C, H), transposed)
        "fc_w": 0.1 * jax.random.normal(keys[6], (H, C), jnp.float32),
        "fc_b": 0.1 * jax.random.normal(keys[7], (1, C), jnp.float32),
    }

    tokens = jax.random.randint(keys[8], (B, L), 0, VOCAB, dtype=jnp.int32)

    logits = cnn_lstm_forward(tokens, params, K=K, pool=POOL, H=H)
    logits = jax.block_until_ready(logits)

    ref = reference_forward(tokens, params, K=K, pool=POOL, H=H)
    # bf16 MXU operands on the two big matmuls -> bf16-appropriate tolerance.
    np.testing.assert_allclose(np.asarray(logits), np.asarray(ref),
                               rtol=3e-2, atol=3e-3)

    print("KERNEL_OK")
</pallas_src>

<mosaic_0001>
module attributes {stable_mosaic.version = 11 : i64} {
  func.func @fused_cnn_lstm_kernel(%arg0: i32, %arg1: memref<128x32xbf16, #tpu.memory_space<vmem>>, %arg2: memref<160x16xbf16, #tpu.memory_space<vmem>>, %arg3: memref<1x16xf32, #tpu.memory_space<vmem>>, %arg4: memref<16x128xbf16, #tpu.memory_space<vmem>>, %arg5: memref<32x128xf32, #tpu.memory_space<vmem>>, %arg6: memref<1x128xf32, #tpu.memory_space<vmem>>, %arg7: memref<32x128xf32, #tpu.memory_space<vmem>>, %arg8: memref<1x128xf32, #tpu.memory_space<vmem>>, %arg9: memref<8x128xf32, #tpu.memory_space<vmem>>, %arg10: memref<24x128xf32, #tpu.memory_space<vmem>>) attributes {dimension_semantics = [#tpu.dimension_semantics<arbitrary>], iteration_bounds = array<i64: 1>, scalar_prefetch = 0 : i64, scratch_operands = 1 : i64, tpu.core_type = #tpu.core_type<tc>, window_params = [{pipeline_mode = #tpu.pipeline_mode<synchronous>, transform_indices = @transform_0, window_bounds = array<i64: 128, 32>}, {pipeline_mode = #tpu.pipeline_mode<synchronous>, transform_indices = @transform_1, window_bounds = array<i64: 160, 16>}, {pipeline_mode = #tpu.pipeline_mode<synchronous>, transform_indices = @transform_2, window_bounds = array<i64: 1, 16>}, {pipeline_mode = #tpu.pipeline_mode<synchronous>, transform_indices = @transform_3, window_bounds = array<i64: 16, 128>}, {pipeline_mode = #tpu.pipeline_mode<synchronous>, transform_indices = @transform_4, window_bounds = array<i64: 32, 128>}, {pipeline_mode = #tpu.pipeline_mode<synchronous>, transform_indices = @transform_5, window_bounds = array<i64: 1, 128>}, {pipeline_mode = #tpu.pipeline_mode<synchronous>, transform_indices = @transform_6, window_bounds = array<i64: 32, 128>}, {pipeline_mode = #tpu.pipeline_mode<synchronous>, transform_indices = @transform_7, window_bounds = array<i64: 1, 128>}, {pipeline_mode = #tpu.pipeline_mode<synchronous>, transform_indices = @transform_8, window_bounds = array<i64: 8, 128>}]} {
    %c0 = arith.constant 0 : index
    %c0_0 = arith.constant 0 : index
    %0 = vector.load %arg1[%c0, %c0_0] : memref<128x32xbf16, #tpu.memory_space<vmem>>, vector<96x32xbf16>
    %c0_1 = arith.constant 0 : index
    %c0_2 = arith.constant 0 : index
    %1 = vector.load %arg2[%c0_1, %c0_2] : memref<160x16xbf16, #tpu.memory_space<vmem>>, vector<32x16xbf16>
    %cst = arith.constant dense<0.000000e+00> : vector<96x16xf32>
    %2 = tpu.matmul %0, %1, %cst {dimension_numbers = #tpu.dot_dimension_numbers<[1], [0], [0], [1], [0, 0, 1, 1], [], []>} : vector<96x32xbf16>, vector<32x16xbf16>, vector<96x16xf32> -> vector<96x16xf32>
    %c8 = arith.constant 8 : index
    %c0_3 = arith.constant 0 : index
    %3 = vector.load %arg1[%c8, %c0_3] : memref<128x32xbf16, #tpu.memory_space<vmem>>, vector<96x32xbf16>
    %c32 = arith.constant 32 : index
    %c0_4 = arith.constant 0 : index
    %4 = vector.load %arg2[%c32, %c0_4] : memref<160x16xbf16, #tpu.memory_space<vmem>>, vector<32x16xbf16>
    %cst_5 = arith.constant dense<0.000000e+00> : vector<96x16xf32>
    %5 = tpu.matmul %3, %4, %cst_5 {dimension_numbers = #tpu.dot_dimension_numbers<[1], [0], [0], [1], [0, 0, 1, 1], [], []>} : vector<96x32xbf16>, vector<32x16xbf16>, vector<96x16xf32> -> vector<96x16xf32>
    %6 = arith.addf %2, %5 : vector<96x16xf32>
    %c16 = arith.constant 16 : index
    %c0_6 = arith.constant 0 : index
    %7 = vector.load %arg1[%c16, %c0_6] : memref<128x32xbf16, #tpu.memory_space<vmem>>, vector<96x32xbf16>
    %c64 = arith.constant 64 : index
    %c0_7 = arith.constant 0 : index
    %8 = vector.load %arg2[%c64, %c0_7] : memref<160x16xbf16, #tpu.memory_space<vmem>>, vector<32x16xbf16>
    %cst_8 = arith.constant dense<0.000000e+00> : vector<96x16xf32>
    %9 = tpu.matmul %7, %8, %cst_8 {dimension_numbers = #tpu.dot_dimension_numbers<[1], [0], [0], [1], [0, 0, 1, 1], [], []>} : vector<96x32xbf16>, vector<32x16xbf16>, vector<96x16xf32> -> vector<96x16xf32>
    %10 = arith.addf %6, %9 : vector<96x16xf32>
    %c24 = arith.constant 24 : index
    %c0_9 = arith.constant 0 : index
    %11 = vector.load %arg1[%c24, %c0_9] : memref<128x32xbf16, #tpu.memory_space<vmem>>, vector<96x32xbf16>
    %c96 = arith.constant 96 : index
    %c0_10 = arith.constant 0 : index
    %12 = vector.load %arg2[%c96, %c0_10] : memref<160x16xbf16, #tpu.memory_space<vmem>>, vector<32x16xbf16>
    %cst_11 = arith.constant dense<0.000000e+00> : vector<96x16xf32>
    %13 = tpu.matmul %11, %12, %cst_11 {dimension_numbers = #tpu.dot_dimension_numbers<[1], [0], [0], [1], [0, 0, 1, 1], [], []>} : vector<96x32xbf16>, vector<32x16xbf16>, vector<96x16xf32> -> vector<96x16xf32>
    %14 = arith.addf %10, %13 : vector<96x16xf32>
    %c32_12 = arith.constant 32 : index
    %c0_13 = arith.constant 0 : index
    %15 = vector.load %arg1[%c32_12, %c0_13] : memref<128x32xbf16, #tpu.memory_space<vmem>>, vector<96x32xbf16>
    %c128 = arith.constant 128 : index
    %c0_14 = arith.constant 0 : index
    %16 = vector.load %arg2[%c128, %c0_14] : memref<160x16xbf16, #tpu.memory_space<vmem>>, vector<32x16xbf16>
    %cst_15 = arith.constant dense<0.000000e+00> : vector<96x16xf32>
    %17 = tpu.matmul %15, %16, %cst_15 {dimension_numbers = #tpu.dot_dimension_numbers<[1], [0], [0], [1], [0, 0, 1, 1], [], []>} : vector<96x32xbf16>, vector<32x16xbf16>, vector<96x16xf32> -> vector<96x16xf32>
    %18 = arith.addf %14, %17 : vector<96x16xf32>
    %c0_16 = arith.constant 0 : index
    %c0_17 = arith.constant 0 : index
    %19 = vector.load %arg3[%c0_16, %c0_17] : memref<1x16xf32, #tpu.memory_space<vmem>>, vector<1x16xf32>
    %20 = vector.broadcast %19 : vector<1x16xf32> to vector<96x16xf32>
    %21 = arith.addf %18, %20 : vector<96x16xf32>
    %cst_18 = arith.constant 0.000000e+00 : f32
    %22 = vector.broadcast %cst_18 : f32 to vector<96x16xf32>
    %23 = arith.maximumf %21, %22 : vector<96x16xf32>
    %24 = vector.shape_cast %23 : vector<96x16xf32> to vector<3x32x16xf32>
    %25 = vector.extract_strided_slice %24 {offsets = [0, 0, 0], sizes = [3, 8, 16], strides = [1, 1, 1]} : vector<3x32x16xf32> to vector<3x8x16xf32>
    %26 = vector.extract_strided_slice %24 {offsets = [0, 8, 0], sizes = [3, 8, 16], strides = [1, 1, 1]} : vector<3x32x16xf32> to vector<3x8x16xf32>
    %27 = arith.maximumf %25, %26 : vector<3x8x16xf32>
    %28 = vector.extract_strided_slice %24 {offsets = [0, 16, 0], sizes = [3, 8, 16], strides = [1, 1, 1]} : vector<3x32x16xf32> to vector<3x8x16xf32>
    %29 = arith.maximumf %27, %28 : vector<3x8x16xf32>
    %30 = vector.extract_strided_slice %24 {offsets = [0, 24, 0], sizes = [3, 8, 16], strides = [1, 1, 1]} : vector<3x32x16xf32> to vector<3x8x16xf32>
    %31 = arith.maximumf %29, %30 : vector<3x8x16xf32>
    %32 = vector.shape_cast %31 : vector<3x8x16xf32> to vector<24x16xf32>
    %33 = arith.truncf %32 : vector<24x16xf32> to vector<24x16xbf16>
    %c0_19 = arith.constant 0 : index
    %c0_20 = arith.constant 0 : index
    %34 = vector.load %arg4[%c0_19, %c0_20] : memref<16x128xbf16, #tpu.memory_space<vmem>>, vector<16x128xbf16>
    %cst_21 = arith.constant dense<0.000000e+00> : vector<24x128xf32>
    %35 = tpu.matmul %33, %34, %cst_21 {dimension_numbers = #tpu.dot_dimension_numbers<[1], [0], [0], [1], [0, 0, 1, 1], [], []>} : vector<24x16xbf16>, vector<16x128xbf16>, vector<24x128xf32> -> vector<24x128xf32>
    %c0_22 = arith.constant 0 : index
    %c0_23 = arith.constant 0 : index
    %36 = vector.load %arg6[%c0_22, %c0_23] : memref<1x128xf32, #tpu.memory_space<vmem>>, vector<1x128xf32>
    %37 = vector.broadcast %36 : vector<1x128xf32> to vector<24x128xf32>
    %38 = arith.addf %35, %37 : vector<24x128xf32>
    %c0_24 = arith.constant 0 : index
    %c0_25 = arith.constant 0 : index
    %39 = vector.load %arg10[%c0_24, %c0_25] : memref<24x128xf32, #tpu.memory_space<vmem>>, vector<24x128xf32>
    tpu.vector_store %arg10[%c0_24, %c0_25], %38 {strides = array<i32>} : memref<24x128xf32, #tpu.memory_space<vmem>>, vector<24x128xf32>,
    %c0_26 = arith.constant 0 : index
    %c0_27 = arith.constant 0 : index
    %40 = vector.load %arg5[%c0_26, %c0_27] : memref<32x128xf32, #tpu.memory_space<vmem>>, vector<32x128xf32>
    %cst_28 = arith.constant 0.000000e+00 : f32
    %41 = vector.broadcast %cst_28 : f32 to vector<8x32xf32>
    %cst_29 = arith.constant 0.000000e+00 : f32
    %42 = vector.broadcast %cst_29 : f32 to vector<8x32xf32>
    %c0_i32 = arith.constant 0 : i32
    %c8_i32 = arith.constant 8 : i32
    %43 = arith.muli %c0_i32, %c8_i32 : i32
    %44 = tpu.assume_multiple %43, 8 : i32
    %45 = arith.index_cast %44 : i32 to index
    %c0_30 = arith.constant 0 : index
    %46 = vector.load %arg10[%45, %c0_30] : memref<24x128xf32, #tpu.memory_space<vmem>>, vector<8x128xf32>
    %cst_31 = arith.constant dense<0.000000e+00> : vector<8x128xf32>
    %47 = tpu.matmul %41, %40, %cst_31 {dimension_numbers = #tpu.dot_dimension_numbers<[1], [0], [0], [1], [0, 0, 1, 1], [], []>} : vector<8x32xf32>, vector<32x128xf32>, vector<8x128xf32> -> vector<8x128xf32>
    %48 = arith.addf %46, %47 : vector<8x128xf32>
    %49 = vector.extract_strided_slice %48 {offsets = [0, 0], sizes = [8, 96], strides = [1, 1]} : vector<8x128xf32> to vector<8x96xf32>
    %50 = arith.negf %49 : vector<8x96xf32>
    %51 = math.exp %50 : vector<8x96xf32>
    %cst_32 = arith.constant 1.000000e+00 : f32
    %52 = vector.broadcast %cst_32 : f32 to vector<8x96xf32>
    %53 = arith.addf %52, %51 : vector<8x96xf32>
    %54 = arith.divf %52, %53 : vector<8x96xf32>
    %55 = vector.extract_strided_slice %48 {offsets = [0, 96], sizes = [8, 32], strides = [1, 1]} : vector<8x128xf32> to vector<8x32xf32>
    %56 = math.tanh %55 : vector<8x32xf32>
    %57 = vector.extract_strided_slice %54 {offsets = [0, 0], sizes = [8, 32], strides = [1, 1]} : vector<8x96xf32> to vector<8x32xf32>
    %58 = vector.extract_strided_slice %54 {offsets = [0, 32], sizes = [8, 32], strides = [1, 1]} : vector<8x96xf32> to vector<8x32xf32>
    %59 = vector.extract_strided_slice %54 {offsets = [0, 64], sizes = [8, 32], strides = [1, 1]} : vector<8x96xf32> to vector<8x32xf32>
    %60 = arith.mulf %58, %42 : vector<8x32xf32>
    %61 = arith.mulf %57, %56 : vector<8x32xf32>
    %62 = arith.addf %60, %61 : vector<8x32xf32>
    %63 = math.tanh %62 : vector<8x32xf32>
    %64 = arith.mulf %59, %63 : vector<8x32xf32>
    %c1_i32 = arith.constant 1 : i32
    %c8_i32_33 = arith.constant 8 : i32
    %65 = arith.muli %c1_i32, %c8_i32_33 : i32
    %66 = tpu.assume_multiple %65, 8 : i32
    %67 = arith.index_cast %66 : i32 to index
    %c0_34 = arith.constant 0 : index
    %68 = vector.load %arg10[%67, %c0_34] : memref<24x128xf32, #tpu.memory_space<vmem>>, vector<8x128xf32>
    %cst_35 = arith.constant dense<0.000000e+00> : vector<8x128xf32>
    %69 = tpu.matmul %64, %40, %cst_35 {dimension_numbers = #tpu.dot_dimension_numbers<[1], [0], [0], [1], [0, 0, 1, 1], [], []>} : vector<8x32xf32>, vector<32x128xf32>, vector<8x128xf32> -> vector<8x128xf32>
    %70 = arith.addf %68, %69 : vector<8x128xf32>
    %71 = vector.extract_strided_slice %70 {offsets = [0, 0], sizes = [8, 96], strides = [1, 1]} : vector<8x128xf32> to vector<8x96xf32>
    %72 = arith.negf %71 : vector<8x96xf32>
    %73 = math.exp %72 : vector<8x96xf32>
    %cst_36 = arith.constant 1.000000e+00 : f32
    %74 = vector.broadcast %cst_36 : f32 to vector<8x96xf32>
    %75 = arith.addf %74, %73 : vector<8x96xf32>
    %76 = arith.divf %74, %75 : vector<8x96xf32>
    %77 = vector.extract_strided_slice %70 {offsets = [0, 96], sizes = [8, 32], strides = [1, 1]} : vector<8x128xf32> to vector<8x32xf32>
    %78 = math.tanh %77 : vector<8x32xf32>
    %79 = vector.extract_strided_slice %76 {offsets = [0, 0], sizes = [8, 32], strides = [1, 1]} : vector<8x96xf32> to vector<8x32xf32>
    %80 = vector.extract_strided_slice %76 {offsets = [0, 32], sizes = [8, 32], strides = [1, 1]} : vector<8x96xf32> to vector<8x32xf32>
    %81 = vector.extract_strided_slice %76 {offsets = [0, 64], sizes = [8, 32], strides = [1, 1]} : vector<8x96xf32> to vector<8x32xf32>
    %82 = arith.mulf %80, %62 : vector<8x32xf32>
    %83 = arith.mulf %79, %78 : vector<8x32xf32>
    %84 = arith.addf %82, %83 : vector<8x32xf32>
    %85 = math.tanh %84 : vector<8x32xf32>
    %86 = arith.mulf %81, %85 : vector<8x32xf32>
    %c2_i32 = arith.constant 2 : i32
    %c8_i32_37 = arith.constant 8 : i32
    %87 = arith.muli %c2_i32, %c8_i32_37 : i32
    %88 = tpu.assume_multiple %87, 8 : i32
    %89 = arith.index_cast %88 : i32 to index
    %c0_38 = arith.constant 0 : index
    %90 = vector.load %arg10[%89, %c0_38] : memref<24x128xf32, #tpu.memory_space<vmem>>, vector<8x128xf32>
    %cst_39 = arith.constant dense<0.000000e+00> : vector<8x128xf32>
    %91 = tpu.matmul %86, %40, %cst_39 {dimension_numbers = #tpu.dot_dimension_numbers<[1], [0], [0], [1], [0, 0, 1, 1], [], []>} : vector<8x32xf32>, vector<32x128xf32>, vector<8x128xf32> -> vector<8x128xf32>
    %92 = arith.addf %90, %91 : vector<8x128xf32>
    %93 = vector.extract_strided_slice %92 {offsets = [0, 0], sizes = [8, 96], strides = [1, 1]} : vector<8x128xf32> to vector<8x96xf32>
    %94 = arith.negf %93 : vector<8x96xf32>
    %95 = math.exp %94 : vector<8x96xf32>
    %cst_40 = arith.constant 1.000000e+00 : f32
    %96 = vector.broadcast %cst_40 : f32 to vector<8x96xf32>
    %97 = arith.addf %96, %95 : vector<8x96xf32>
    %98 = arith.divf %96, %97 : vector<8x96xf32>
    %99 = vector.extract_strided_slice %92 {offsets = [0, 96], sizes = [8, 32], strides = [1, 1]} : vector<8x128xf32> to vector<8x32xf32>
    %100 = math.tanh %99 : vector<8x32xf32>
    %101 = vector.extract_strided_slice %98 {offsets = [0, 0], sizes = [8, 32], strides = [1, 1]} : vector<8x96xf32> to vector<8x32xf32>
    %102 = vector.extract_strided_slice %98 {offsets = [0, 32], sizes = [8, 32], strides = [1, 1]} : vector<8x96xf32> to vector<8x32xf32>
    %103 = vector.extract_strided_slice %98 {offsets = [0, 64], sizes = [8, 32], strides = [1, 1]} : vector<8x96xf32> to vector<8x32xf32>
    %104 = arith.mulf %102, %84 : vector<8x32xf32>
    %105 = arith.mulf %101, %100 : vector<8x32xf32>
    %106 = arith.addf %104, %105 : vector<8x32xf32>
    %107 = math.tanh %106 : vector<8x32xf32>
    %108 = arith.mulf %103, %107 : vector<8x32xf32>
    %c3_i32 = arith.constant 3 : i32
    %c0_41 = arith.constant 0 : index
    %c0_42 = arith.constant 0 : index
    %109 = vector.load %arg7[%c0_41, %c0_42] : memref<32x128xf32, #tpu.memory_space<vmem>>, vector<32x128xf32>
    %cst_43 = arith.constant dense<0.000000e+00> : vector<8x128xf32>
    %110 = tpu.matmul %108, %109, %cst_43 {dimension_numbers = #tpu.dot_dimension_numbers<[1], [0], [0], [1], [0, 0, 1, 1], [], []>} : vector<8x32xf32>, vector<32x128xf32>, vector<8x128xf32> -> vector<8x128xf32>
    %c0_44 = arith.constant 0 : index
    %c0_45 = arith.constant 0 : index
    %111 = vector.load %arg8[%c0_44, %c0_45] : memref<1x128xf32, #tpu.memory_space<vmem>>, vector<1x128xf32>
    %112 = vector.broadcast %111 : vector<1x128xf32> to vector<8x128xf32>
    %113 = arith.addf %110, %112 : vector<8x128xf32>
    %c0_46 = arith.constant 0 : index
    %c0_47 = arith.constant 0 : index
    %114 = vector.load %arg9[%c0_46, %c0_47] : memref<8x128xf32, #tpu.memory_space<vmem>>, vector<8x128xf32>
    tpu.vector_store %arg9[%c0_46, %c0_47], %113 {strides = array<i32>} : memref<8x128xf32, #tpu.memory_space<vmem>>, vector<8x128xf32>,
    return
  }
  func.func @transform_0(%arg0: i32) -> (i32, i32) {
    %c0_i32 = arith.constant 0 : i32
    %c0_i32_0 = arith.constant 0 : i32
    %c0_i32_1 = arith.constant 0 : i32
    return %c0_i32, %c0_i32_0 : i32, i32
  }
  func.func @transform_1(%arg0: i32) -> (i32, i32) {
    %c0_i32 = arith.constant 0 : i32
    %c0_i32_0 = arith.constant 0 : i32
    %c0_i32_1 = arith.constant 0 : i32
    return %c0_i32, %c0_i32_0 : i32, i32
  }
  func.func @transform_2(%arg0: i32) -> (i32, i32) {
    %c0_i32 = arith.constant 0 : i32
    %c0_i32_0 = arith.constant 0 : i32
    %c0_i32_1 = arith.constant 0 : i32
    return %c0_i32, %c0_i32_0 : i32, i32
  }
  func.func @transform_3(%arg0: i32) -> (i32, i32) {
    %c0_i32 = arith.constant 0 : i32
    %c0_i32_0 = arith.constant 0 : i32
    %c0_i32_1 = arith.constant 0 : i32
    return %c0_i32, %c0_i32_0 : i32, i32
  }
  func.func @transform_4(%arg0: i32) -> (i32, i32) {
    %c0_i32 = arith.constant 0 : i32
    %c0_i32_0 = arith.constant 0 : i32
    %c0_i32_1 = arith.constant 0 : i32
    return %c0_i32, %c0_i32_0 : i32, i32
  }
  func.func @transform_5(%arg0: i32) -> (i32, i32) {
    %c0_i32 = arith.constant 0 : i32
    %c0_i32_0 = arith.constant 0 : i32
    %c0_i32_1 = arith.constant 0 : i32
    return %c0_i32, %c0_i32_0 : i32, i32
  }
  func.func @transform_6(%arg0: i32) -> (i32, i32) {
    %c0_i32 = arith.constant 0 : i32
    %c0_i32_0 = arith.constant 0 : i32
    %c0_i32_1 = arith.constant 0 : i32
    return %c0_i32, %c0_i32_0 : i32, i32
  }
  func.func @transform_7(%arg0: i32) -> (i32, i32) {
    %c0_i32 = arith.constant 0 : i32
    %c0_i32_0 = arith.constant 0 : i32
    %c0_i32_1 = arith.constant 0 : i32
    return %c0_i32, %c0_i32_0 : i32, i32
  }
  func.func @transform_8(%arg0: i32) -> (i32, i32) {
    %c0_i32 = arith.constant 0 : i32
    %c0_i32_0 = arith.constant 0 : i32
    %c0_i32_1 = arith.constant 0 : i32
    return %c0_i32, %c0_i32_0 : i32, i32
  }
}

</mosaic_0001>

<llo_original>
// kernel: tpu_custom_call.1
$region0: #{tpu_custom_call.1}
  #allocation0 [shape = 'u32[]', space=smem, size = 0x4, offset = 0x4, fixed_abs, tag = 'smem constant byte address 0x4 - core index']
  #allocation1 [shape = 'u32[144,128]{1,0:T(1,128)}', space=vmem, size = 0x12000, scoped, tag = 'internal scratch']
  #allocation2 [shape = 'f32[24,128]{1,0:T(8,128)}', space=vmem, size = 0x3000, scoped, tag = 'scratch operand']
  %s0 = inlined_call_operand.vmem [shape: bf16[128,32], index: 0, kind: input, shape index: {}]
  %s1 = inlined_call_operand.vmem [shape: bf16[160,16], index: 1, kind: input, shape index: {}]
  %s2 = inlined_call_operand.vmem [shape: f32[1,16], index: 2, kind: input, shape index: {}]
  %s3 = inlined_call_operand.vmem [shape: bf16[16,128], index: 3, kind: input, shape index: {}]
  %s4 = inlined_call_operand.vmem [shape: f32[32,128], index: 4, kind: input, shape index: {}]
  %s5 = inlined_call_operand.vmem [shape: f32[1,128], index: 5, kind: input, shape index: {}]
  %s6 = inlined_call_operand.vmem [shape: f32[32,128], index: 6, kind: input, shape index: {}]
  %s7 = inlined_call_operand.vmem [shape: f32[1,128], index: 7, kind: input, shape index: {}]
  %s8 = inlined_call_operand.hbm [shape: f32[8,128], index: 8, kind: output, shape index: {}]
  %s9 = sld [smem:[#allocation0]]
  $region42: #{tpu_custom_call.1} parent=0
    _
  %s11 = ssub.s32 1, %s9
  %s12 = scalar_select 0, %s11, %s9
  $region1: #{tpu_custom_call.1} parent=0
    #allocation3 [shape = 'u8[4096]{0}', space=vmem, size = 0x1000, scoped, tag = 'output window, operand 0, single buffered']
    #allocation4 [shape = 's32[1]{0}', space=sflag, size = 0x4, scoped, tag = 'scoped memory for tpu_custom_call.1']
    %13 = vsyncpa [#allocation4], 0
    // Predicated region
    $region2: #{tpu_custom_call.1} parent=1 // pred_check
      _
    $region3: #{tpu_custom_call.1} parent=1 // pred_check_branch
      %15 = sbr.rel (0) target = $region5
    $region4: #{tpu_custom_call.1} parent=1 // pred_region
      _
    $region5: #{tpu_custom_call.1} parent=1 // pred_fallthru
      _
    // Predicated region
    $region6: #{tpu_custom_call.1} parent=1 // pred_check
      _
    $region7: #{tpu_custom_call.1} parent=1 // pred_check_branch
      %17 = sbr.rel (0) target = $region9
    $region8: #{tpu_custom_call.1} parent=1 // pred_region
      _
    $region9: #{tpu_custom_call.1} parent=1 // pred_fallthru
      _
    // Predicated region
    $region10: #{tpu_custom_call.1} parent=1 // pred_check
      _
    $region11: #{tpu_custom_call.1} parent=1 // pred_check_branch
      %19 = sbr.rel (0) target = $region13
    $region12: #{tpu_custom_call.1} parent=1 // pred_region
      _
    $region13: #{tpu_custom_call.1} parent=1 // pred_fallthru
      _
    // Predicated region
    $region14: #{tpu_custom_call.1} parent=1 // pred_check
      _
    $region15: #{tpu_custom_call.1} parent=1 // pred_check_branch
      %21 = sbr.rel (0) target = $region17
    $region16: #{tpu_custom_call.1} parent=1 // pred_region
      _
    $region17: #{tpu_custom_call.1} parent=1 // pred_fallthru
      _
    // Predicated region
    $region18: #{tpu_custom_call.1} parent=1 // pred_check
      _
    $region19: #{tpu_custom_call.1} parent=1 // pred_check_branch
      %23 = sbr.rel (0) target = $region21
    $region20: #{tpu_custom_call.1} parent=1 // pred_region
      _
    $region21: #{tpu_custom_call.1} parent=1 // pred_fallthru
      _
    // Predicated region
    $region22: #{tpu_custom_call.1} parent=1 // pred_check
      _
    $region23: #{tpu_custom_call.1} parent=1 // pred_check_branch
      %25 = sbr.rel (0) target = $region25
    $region24: #{tpu_custom_call.1} parent=1 // pred_region
      _
    $region25: #{tpu_custom_call.1} parent=1 // pred_fallthru
      _
    // Predicated region
    $region26: #{tpu_custom_call.1} parent=1 // pred_check
      _
    $region27: #{tpu_custom_call.1} parent=1 // pred_check_branch
      %27 = sbr.rel (0) target = $region29
    $region28: #{tpu_custom_call.1} parent=1 // pred_region
      _
    $region29: #{tpu_custom_call.1} parent=1 // pred_fallthru
      _
    // Predicated region
    $region30: #{tpu_custom_call.1} parent=1 // pred_check
      _
    $region31: #{tpu_custom_call.1} parent=1 // pred_check_branch
      %29 = sbr.rel (0) target = $region33
    $region32: #{tpu_custom_call.1} parent=1 // pred_region
      _
    $region33: #{tpu_custom_call.1} parent=1 // pred_fallthru
      _
    %v31 = vld [vmem:[%s0] sm:$0xf]
    %v32 = vld [vmem:[%s0 + $0x4] sm:$0xf]
    %v33 = vld [vmem:[%s0 + $0x8] sm:$0xf]
    %v34 = vld [vmem:[%s0 + $0xc] sm:$0xf]
    %v35 = vld [vmem:[%s0 + $0x10] sm:$0xf]
    %v36 = vld [vmem:[%s0 + $0x14] sm:$0xf]
    %v37 = vld [vmem:[%s0 + $0x18] sm:$0xf]
    %v38 = vld [vmem:[%s0 + $0x1c] sm:$0xf]
    %v39 = vld [vmem:[%s0 + $0x20] sm:$0xf]
    %v40 = vld [vmem:[%s0 + $0x24] sm:$0xf]
    %v41 = vld [vmem:[%s0 + $0x28] sm:$0xf]
    %v42 = vld [vmem:[%s0 + $0x2c] sm:$0xf]
    %v43 = vld [vmem:[%s1] sm:$0xf]
    %v44 = vld [vmem:[%s1 + $0x4] sm:$0xf]
    %v45 = vld [vmem:[%s1 + $0x8] sm:$0xf]
    %v46 = vld [vmem:[%s1 + $0xc] sm:$0xf]
    %v47 = vld [vmem:[%s0 + $0x30] sm:$0xf]
    %v48 = vld [vmem:[%s1 + $0x10] sm:$0xf]
    %v49 = vld [vmem:[%s1 + $0x14] sm:$0xf]
    %v50 = vld [vmem:[%s1 + $0x18] sm:$0xf]
    %v51 = vld [vmem:[%s1 + $0x1c] sm:$0xf]
    %v64 = vunpack.c.l.b16 %v32
    %v65 = vunpack.c.l.b16 %v33
    %v66 = vunpack.c.l.b16 %v34
    %v67 = vunpack.c.l.b16 %v35
    %v68 = vunpack.c.l.b16 %v36
    %v69 = vunpack.c.l.b16 %v37
    %v70 = vunpack.c.l.b16 %v38
    %v71 = vunpack.c.l.b16 %v39
    %v72 = vunpack.c.l.b16 %v40
    %v73 = vunpack.c.l.b16 %v41
    %v74 = vunpack.c.l.b16 %v42
    %v75 = vunpack.c.l.b16 %v47
    %v76 = vpack.c.b16 %v65, %v64
    %v77 = vpack.c.b16 %v67, %v66
    %v78 = vpack.c.b16 %v69, %v68
    %v79 = vpack.c.b16 %v71, %v70
    %v80 = vpack.c.b16 %v73, %v72
    %v81 = vpack.c.b16 %v75, %v74
    %v86 = vunpack.c.l.b16 %v48
    %v87 = vunpack.c.l.b16 %v49
    %v88 = vunpack.c.l.b16 %v50
    %v89 = vunpack.c.l.b16 %v51
    %v90 = vpack.c.b16 %v87, %v86
    %v91 = vpack.c.b16 %v89, %v88
    %vm94 = vcmask 261120
    %v96 = vsel %vm94, %v76, 0
    %v99 = vsel %vm94, %v77, 0
    %v102 = vsel %vm94, %v78, 0
    %v105 = vsel %vm94, %v79, 0
    %v108 = vsel %vm94, %v80, 0
    %v111 = vsel %vm94, %v81, 0
    %113 = vmatprep.subr.bf16.mxu0 0
    %114 = vmatpush1.bf16.msra.mxu0 %v90
    %115 = vmatprep.subr.bf16.mxu0 0
    %116 = vmatpush1.bf16.msra.mxu0 %v91
    %117 = vmatprep.subr.bf16.mxu0 0
    %118 = vmatpush1.bf16.msra.mxu0 0
    %119 = vmatprep.subr.bf16.mxu0 0
    %120 = vmatpush1.bf16.msra.mxu0 0
    %121 = vmatprep.subr.bf16.mxu0 0
    %122 = vmatpush1.bf16.msra.mxu0 0
    %123 = vmatprep.subr.bf16.mxu0 0
    %124 = vmatpush1.bf16.msra.mxu0 0
    %125 = vmatprep.subr.bf16.mxu0 0
    %126 = vmatpush1.bf16.msra.mxu0 0
    %127 = vmatprep.subr.bf16.mxu0 0
    %128 = vmatpush1.bf16.msra.mxu0 0
    %129 = vmatprep.subr.bf16.mxu0 0
    %130 = vmatpush1.bf16.msra.mxu0 0
    %131 = vmatprep.subr.bf16.mxu0 0
    %132 = vmatpush1.bf16.msra.mxu0 0
    %133 = vmatprep.subr.bf16.mxu0 0
    %134 = vmatpush1.bf16.msra.mxu0 0
    %135 = vmatprep.subr.bf16.mxu0 0
    %136 = vmatpush1.bf16.msra.mxu0 0
    %137 = vmatprep.subr.bf16.mxu0 0
    %138 = vmatpush1.bf16.msra.mxu0 0
    %139 = vmatprep.subr.bf16.mxu0 0
    %140 = vmatpush1.bf16.msra.mxu0 0
    %141 = vmatprep.subr.bf16.mxu0 0
    %142 = vmatpush1.bf16.msra.mxu0 0
    %143 = vmatprep.subr.bf16.mxu0 0
    %144 = vmatpush1.bf16.msra.mxu0 0
    %145 = vmatprep.mubr.bf16.mxu0 0
    %146 = vmatmul.mubr.bf16.gmra.mrb[0].mxu0 %v96
    %v147 = vpop.f32.mrb[0].mxu0
    %v148 = vadd.f32 0.0, %v147
    %v149 = vpop.f32.mrb[0].mxu0
    %v150 = vpop.f32.mrb[0].mxu0
    %v151 = vadd.f32 0.0, %v150
    %v152 = vpop.f32.mrb[0].mxu0
    %153 = vmatprep.mubr.bf16.mxu0 0
    %154 = vmatmul.mubr.bf16.gmra.mrb[0].mxu0 %v99
    %v155 = vpop.f32.mrb[0].mxu0
    %v156 = vadd.f32 0.0, %v155
    %v157 = vpop.f32.mrb[0].mxu0
    %v158 = vpop.f32.mrb[0].mxu0
    %v159 = vadd.f32 0.0, %v158
    %v160 = vpop.f32.mrb[0].mxu0
    %161 = vmatprep.mubr.bf16.mxu0 0
    %162 = vmatmul.mubr.bf16.gmra.mrb[0].mxu0 %v102
    %v163 = vpop.f32.mrb[0].mxu0
    %v164 = vadd.f32 0.0, %v163
    %v165 = vpop.f32.mrb[0].mxu0
    %v166 = vpop.f32.mrb[0].mxu0
    %v167 = vadd.f32 0.0, %v166
    %v168 = vpop.f32.mrb[0].mxu0
    %169 = vmatprep.mubr.bf16.mxu0 0
    %170 = vmatmul.mubr.bf16.gmra.mrb[0].mxu0 %v105
    %v171 = vpop.f32.mrb[0].mxu0
    %v172 = vadd.f32 0.0, %v171
    %v173 = vpop.f32.mrb[0].mxu0
    %v174 = vpop.f32.mrb[0].mxu0
    %v175 = vadd.f32 0.0, %v174
    %v176 = vpop.f32.mrb[0].mxu0
    %177 = vmatprep.mubr.bf16.mxu0 0
    %178 = vmatmul.mubr.bf16.gmra.mrb[0].mxu0 %v108
    %v179 = vpop.f32.mrb[0].mxu0
    %v180 = vadd.f32 0.0, %v179
    %v181 = vpop.f32.mrb[0].mxu0
    %v182 = vpop.f32.mrb[0].mxu0
    %v183 = vadd.f32 0.0, %v182
    %v184 = vpop.f32.mrb[0].mxu0
    %185 = vmatprep.mubr.bf16.mxu0 0
    %186 = vmatmul.mubr.bf16.gmra.mrb[0].mxu0 %v111
    %v187 = vpop.f32.mrb[0].mxu0
    %v188 = vadd.f32 0.0, %v187
    %v189 = vpop.f32.mrb[0].mxu0
    %v190 = vpop.f32.mrb[0].mxu0
    %v191 = vadd.f32 0.0, %v190
    %v192 = vpop.f32.mrb[0].mxu0
    %193 = vdwg.mxu0
    %v195 = vunpack.c.l.b16 %v31
    %v196 = vpack.c.b16 %v64, %v195
    %v197 = vpack.c.b16 %v66, %v65
    %v198 = vpack.c.b16 %v68, %v67
    %v199 = vpack.c.b16 %v70, %v69
    %v200 = vpack.c.b16 %v72, %v71
    %v201 = vpack.c.b16 %v74, %v73
    %v206 = vunpack.c.l.b16 %v43
    %v207 = vunpack.c.l.b16 %v44
    %v208 = vunpack.c.l.b16 %v45
    %v209 = vunpack.c.l.b16 %v46
    %v210 = vpack.c.b16 %v207, %v206
    %v211 = vpack.c.b16 %v209, %v208
    %v215 = vsel %vm94, %v196, 0
    %v218 = vsel %vm94, %v197, 0
    %v221 = vsel %vm94, %v198, 0
    %v224 = vsel %vm94, %v199, 0
    %v227 = vsel %vm94, %v200, 0
    %v230 = vsel %vm94, %v201, 0
    %232 = vmatprep.subr.bf16.mxu0 0
    %233 = vmatpush1.bf16.msra.mxu0 %v210
    %234 = vmatprep.subr.bf16.mxu0 0
    %235 = vmatpush1.bf16.msra.mxu0 %v211
    %236 = vmatprep.subr.bf16.mxu0 0
    %237 = vmatpush1.bf16.msra.mxu0 0
    %238 = vmatprep.subr.bf16.mxu0 0
    %239 = vmatpush1.bf16.msra.mxu0 0
    %240 = vmatprep.subr.bf16.mxu0 0
    %241 = vmatpush1.bf16.msra.mxu0 0
    %242 = vmatprep.subr.bf16.mxu0 0
    %243 = vmatpush1.bf16.msra.mxu0 0
    %244 = vmatprep.subr.bf16.mxu0 0
    %245 = vmatpush1.bf16.msra.mxu0 0
    %246 = vmatprep.subr.bf16.mxu0 0
    %247 = vmatpush1.bf16.msra.mxu0 0
    %248 = vmatprep.subr.bf16.mxu0 0
    %249 = vmatpush1.bf16.msra.mxu0 0
    %250 = vmatprep.subr.bf16.mxu0 0
    %251 = vmatpush1.bf16.msra.mxu0 0
    %252 = vmatprep.subr.bf16.mxu0 0
    %253 = vmatpush1.bf16.msra.mxu0 0
    %254 = vmatprep.subr.bf16.mxu0 0
    %255 = vmatpush1.bf16.msra.mxu0 0
    %256 = vmatprep.subr.bf16.mxu0 0
    %257 = vmatpush1.bf16.msra.mxu0 0
    %258 = vmatprep.subr.bf16.mxu0 0
    %259 = vmatpush1.bf16.msra.mxu0 0
    %260 = vmatprep.subr.bf16.mxu0 0
    %261 = vmatpush1.bf16.msra.mxu0 0
    %262 = vmatprep.subr.bf16.mxu0 0
    %263 = vmatpush1.bf16.msra.mxu0 0
    %264 = vmatprep.mubr.bf16.mxu0 0
    %265 = vmatmul.mubr.bf16.gmra.mrb[0].mxu0 %v215
    %v266 = vpop.f32.mrb[0].mxu0
    %v267 = vadd.f32 %v148, %v266
    %v268 = vpop.f32.mrb[0].mxu0
    %v269 = vpop.f32.mrb[0].mxu0
    %v270 = vadd.f32 %v151, %v269
    %v271 = vpop.f32.mrb[0].mxu0
    %272 = vmatprep.mubr.bf16.mxu0 0
    %273 = vmatmul.mubr.bf16.gmra.mrb[0].mxu0 %v218
    %v274 = vpop.f32.mrb[0].mxu0
    %v275 = vadd.f32 %v156, %v274
    %v276 = vpop.f32.mrb[0].mxu0
    %v277 = vpop.f32.mrb[0].mxu0
    %v278 = vadd.f32 %v159, %v277
    %v279 = vpop.f32.mrb[0].mxu0
    %280 = vmatprep.mubr.bf16.mxu0 0
    %281 = vmatmul.mubr.bf16.gmra.mrb[0].mxu0 %v221
    %v282 = vpop.f32.mrb[0].mxu0
    %v283 = vadd.f32 %v164, %v282
    %v284 = vpop.f32.mrb[0].mxu0
    %v285 = vpop.f32.mrb[0].mxu0
    %v286 = vadd.f32 %v167, %v285
    %v287 = vpop.f32.mrb[0].mxu0
    %288 = vmatprep.mubr.bf16.mxu0 0
    %289 = vmatmul.mubr.bf16.gmra.mrb[0].mxu0 %v224
    %v290 = vpop.f32.mrb[0].mxu0
    %v291 = vadd.f32 %v172, %v290
    %v292 = vpop.f32.mrb[0].mxu0
    %v293 = vpop.f32.mrb[0].mxu0
    %v294 = vadd.f32 %v175, %v293
    %v295 = vpop.f32.mrb[0].mxu0
    %296 = vmatprep.mubr.bf16.mxu0 0
    %297 = vmatmul.mubr.bf16.gmra.mrb[0].mxu0 %v227
    %v298 = vpop.f32.mrb[0].mxu0
    %v299 = vadd.f32 %v180, %v298
    %v300 = vpop.f32.mrb[0].mxu0
    %v301 = vpop.f32.mrb[0].mxu0
    %v302 = vadd.f32 %v183, %v301
    %v303 = vpop.f32.mrb[0].mxu0
    %304 = vmatprep.mubr.bf16.mxu0 0
    %305 = vmatmul.mubr.bf16.gmra.mrb[0].mxu0 %v230
    %v306 = vpop.f32.mrb[0].mxu0
    %v307 = vadd.f32 %v188, %v306
    %v308 = vpop.f32.mrb[0].mxu0
    %v309 = vpop.f32.mrb[0].mxu0
    %v310 = vadd.f32 %v191, %v309
    %v311 = vpop.f32.mrb[0].mxu0
    %312 = vdwg.mxu0
    %v313 = vld [vmem:[%s0 + $0x8] sm:$0xf]
    %v314 = vld [vmem:[%s0 + $0xc] sm:$0xf]
    %v315 = vld [vmem:[%s0 + $0x10] sm:$0xf]
    %v316 = vld [vmem:[%s0 + $0x14] sm:$0xf]
    %v317 = vld [vmem:[%s0 + $0x18] sm:$0xf]
    %v318 = vld [vmem:[%s0 + $0x1c] sm:$0xf]
    %v319 = vld [vmem:[%s0 + $0x20] sm:$0xf]
    %v320 = vld [vmem:[%s0 + $0x24] sm:$0xf]
    %v321 = vld [vmem:[%s0 + $0x28] sm:$0xf]
    %v322 = vld [vmem:[%s0 + $0x2c] sm:$0xf]
    %v323 = vld [vmem:[%s0 + $0x30] sm:$0xf]
    %v324 = vld [vmem:[%s0 + $0x34] sm:$0xf]
    %v325 = vld [vmem:[%s1 + $0x20] sm:$0xf]
    %v326 = vld [vmem:[%s1 + $0x24] sm:$0xf]
    %v327 = vld [vmem:[%s1 + $0x28] sm:$0xf]
    %v328 = vld [vmem:[%s1 + $0x2c] sm:$0xf]
    %v341 = vunpack.c.l.b16 %v313
    %v342 = vunpack.c.l.b16 %v314
    %v343 = vunpack.c.l.b16 %v315
    %v344 = vunpack.c.l.b16 %v316
    %v345 = vunpack.c.l.b16 %v317
    %v346 = vunpack.c.l.b16 %v318
    %v347 = vunpack.c.l.b16 %v319
    %v348 = vunpack.c.l.b16 %v320
    %v349 = vunpack.c.l.b16 %v321
    %v350 = vunpack.c.l.b16 %v322
    %v351 = vunpack.c.l.b16 %v323
    %v352 = vunpack.c.l.b16 %v324
    %v353 = vpack.c.b16 %v342, %v341
    %v354 = vpack.c.b16 %v344, %v343
    %v355 = vpack.c.b16 %v346, %v345
    %v356 = vpack.c.b16 %v348, %v347
    %v357 = vpack.c.b16 %v350, %v349
    %v358 = vpack.c.b16 %v352, %v351
    %v363 = vunpack.c.l.b16 %v325
    %v364 = vunpack.c.l.b16 %v326
    %v365 = vunpack.c.l.b16 %v327
    %v366 = vunpack.c.l.b16 %v328
    %v367 = vpack.c.b16 %v364, %v363
    %v368 = vpack.c.b16 %v366, %v365
    %v372 = vsel %vm94, %v353, 0
    %v375 = vsel %vm94, %v354, 0
    %v378 = vsel %vm94, %v355, 0
    %v381 = vsel %vm94, %v356, 0
    %v384 = vsel %vm94, %v357, 0
    %v387 = vsel %vm94, %v358, 0
    %389 = vmatprep.subr.bf16.mxu0 0
    %390 = vmatpush1.bf16.msra.mxu0 %v367
    %391 = vmatprep.subr.bf16.mxu0 0
    %392 = vmatpush1.bf16.msra.mxu0 %v368
    %393 = vmatprep.subr.bf16.mxu0 0
    %394 = vmatpush1.bf16.msra.mxu0 0
    %395 = vmatprep.subr.bf16.mxu0 0
    %396 = vmatpush1.bf16.msra.mxu0 0
    %397 = vmatprep.subr.bf16.mxu0 0
    %398 = vmatpush1.bf16.msra.mxu0 0
    %399 = vmatprep.subr.bf16.mxu0 0
    %400 = vmatpush1.bf16.msra.mxu0 0
    %401 = vmatprep.subr.bf16.mxu0 0
    %402 = vmatpush1.bf16.msra.mxu0 0
    %403 = vmatprep.subr.bf16.mxu0 0
    %404 = vmatpush1.bf16.msra.mxu0 0
    %405 = vmatprep.subr.bf16.mxu0 0
    %406 = vmatpush1.bf16.msra.mxu0 0
    %407 = vmatprep.subr.bf16.mxu0 0
    %408 = vmatpush1.bf16.msra.mxu0 0
    %409 = vmatprep.subr.bf16.mxu0 0
    %410 = vmatpush1.bf16.msra.mxu0 0
    %411 = vmatprep.subr.bf16.mxu0 0
    %412 = vmatpush1.bf16.msra.mxu0 0
    %413 = vmatprep.subr.bf16.mxu0 0
    %414 = vmatpush1.bf16.msra.mxu0 0
    %415 = vmatprep.subr.bf16.mxu0 0
    %416 = vmatpush1.bf16.msra.mxu0 0
    %417 = vmatprep.subr.bf16.mxu0 0
    %418 = vmatpush1.bf16.msra.mxu0 0
    %419 = vmatprep.subr.bf16.mxu0 0
    %420 = vmatpush1.bf16.msra.mxu0 0
    %421 = vmatprep.mubr.bf16.mxu0 0
    %422 = vmatmul.mubr.bf16.gmra.mrb[0].mxu0 %v372
    %v423 = vpop.f32.mrb[0].mxu0
    %v424 = vadd.f32 0.0, %v423
    %v425 = vpop.f32.mrb[0].mxu0
    %v426 = vpop.f32.mrb[0].mxu0
    %v427 = vadd.f32 0.0, %v426
    %v428 = vpop.f32.mrb[0].mxu0
    %429 = vmatprep.mubr.bf16.mxu0 0
    %430 = vmatmul.mubr.bf16.gmra.mrb[0].mxu0 %v375
    %v431 = vpop.f32.mrb[0].mxu0
    %v432 = vadd.f32 0.0, %v431
    %v433 = vpop.f32.mrb[0].mxu0
    %v434 = vpop.f32.mrb[0].mxu0
    %v435 = vadd.f32 0.0, %v434
    %v436 = vpop.f32.mrb[0].mxu0
    %437 = vmatprep.mubr.bf16.mxu0 0
    %438 = vmatmul.mubr.bf16.gmra.mrb[0].mxu0 %v378
    %v439 = vpop.f32.mrb[0].mxu0
    %v440 = vadd.f32 0.0, %v439
    %v441 = vpop.f32.mrb[0].mxu0
    %v442 = vpop.f32.mrb[0].mxu0
    %v443 = vadd.f32 0.0, %v442
    %v444 = vpop.f32.mrb[0].mxu0
    %445 = vmatprep.mubr.bf16.mxu0 0
    %446 = vmatmul.mubr.bf16.gmra.mrb[0].mxu0 %v381
    %v447 = vpop.f32.mrb[0].mxu0
    %v448 = vadd.f32 0.0, %v447
    %v449 = vpop.f32.mrb[0].mxu0
    %v450 = vpop.f32.mrb[0].mxu0
    %v451 = vadd.f32 0.0, %v450
    %v452 = vpop.f32.mrb[0].mxu0
    %453 = vmatprep.mubr.bf16.mxu0 0
    %454 = vmatmul.mubr.bf16.gmra.mrb[0].mxu0 %v384
    %v455 = vpop.f32.mrb[0].mxu0
    %v456 = vadd.f32 0.0, %v455
    %v457 = vpop.f32.mrb[0].mxu0
    %v458 = vpop.f32.mrb[0].mxu0
    %v459 = vadd.f32 0.0, %v458
    %v460 = vpop.f32.mrb[0].mxu0
    %461 = vmatprep.mubr.bf16.mxu0 0
    %462 = vmatmul.mubr.bf16.gmra.mrb[0].mxu0 %v387
    %v463 = vpop.f32.mrb[0].mxu0
    %v464 = vadd.f32 0.0, %v463
    %v465 = vpop.f32.mrb[0].mxu0
    %v466 = vpop.f32.mrb[0].mxu0
    %v467 = vadd.f32 0.0, %v466
    %v468 = vpop.f32.mrb[0].mxu0
    %469 = vdwg.mxu0
    %v470 = vadd.f32 %v267, %v424
    %v471 = vadd.f32 %v270, %v427
    %v472 = vadd.f32 %v275, %v432
    %v473 = vadd.f32 %v278, %v435
    %v474 = vadd.f32 %v283, %v440
    %v475 = vadd.f32 %v286, %v443
    %v476 = vadd.f32 %v291, %v448
    %v477 = vadd.f32 %v294, %v451
    %v478 = vadd.f32 %v299, %v456
    %v479 = vadd.f32 %v302, %v459
    %v480 = vadd.f32 %v307, %v464
    %v481 = vadd.f32 %v310, %v467
    %v482 = vld [vmem:[%s0 + $0xc] sm:$0xf]
    %v483 = vld [vmem:[%s0 + $0x10] sm:$0xf]
    %v484 = vld [vmem:[%s0 + $0x14] sm:$0xf]
    %v485 = vld [vmem:[%s0 + $0x18] sm:$0xf]
    %v486 = vld [vmem:[%s0 + $0x1c] sm:$0xf]
    %v487 = vld [vmem:[%s0 + $0x20] sm:$0xf]
    %v488 = vld [vmem:[%s0 + $0x24] sm:$0xf]
    %v489 = vld [vmem:[%s0 + $0x28] sm:$0xf]
    %v490 = vld [vmem:[%s0 + $0x2c] sm:$0xf]
    %v491 = vld [vmem:[%s0 + $0x30] sm:$0xf]
    %v492 = vld [vmem:[%s0 + $0x34] sm:$0xf]
    %v493 = vld [vmem:[%s0 + $0x38] sm:$0xf]
    %v494 = vld [vmem:[%s1 + $0x30] sm:$0xf]
    %v495 = vld [vmem:[%s1 + $0x34] sm:$0xf]
    %v496 = vld [vmem:[%s1 + $0x38] sm:$0xf]
    %v497 = vld [vmem:[%s1 + $0x3c] sm:$0xf]
    %v510 = vunpack.c.l.b16 %v482
    %v511 = vunpack.c.l.b16 %v483
    %v512 = vunpack.c.l.b16 %v484
    %v513 = vunpack.c.l.b16 %v485
    %v514 = vunpack.c.l.b16 %v486
    %v515 = vunpack.c.l.b16 %v487
    %v516 = vunpack.c.l.b16 %v488
    %v517 = vunpack.c.l.b16 %v489
    %v518 = vunpack.c.l.b16 %v490
    %v519 = vunpack.c.l.b16 %v491
    %v520 = vunpack.c.l.b16 %v492
    %v521 = vunpack.c.l.b16 %v493
    %v522 = vpack.c.b16 %v511, %v510
    %v523 = vpack.c.b16 %v513, %v512
    %v524 = vpack.c.b16 %v515, %v514
    %v525 = vpack.c.b16 %v517, %v516
    %v526 = vpack.c.b16 %v519, %v518
    %v527 = vpack.c.b16 %v521, %v520
    %v532 = vunpack.c.l.b16 %v494
    %v533 = vunpack.c.l.b16 %v495
    %v534 = vunpack.c.l.b16 %v496
    %v535 = vunpack.c.l.b16 %v497
    %v536 = vpack.c.b16 %v533, %v532
    %v537 = vpack.c.b16 %v535, %v534
    %v541 = vsel %vm94, %v522, 0
    %v544 = vsel %vm94, %v523, 0
    %v547 = vsel %vm94, %v524, 0
    %v550 = vsel %vm94, %v525, 0
    %v553 = vsel %vm94, %v526, 0
    %v556 = vsel %vm94, %v527, 0
    %558 = vmatprep.subr.bf16.mxu0 0
    %559 = vmatpush1.bf16.msra.mxu0 %v536
    %560 = vmatprep.subr.bf16.mxu0 0
    %561 = vmatpush1.bf16.msra.mxu0 %v537
    %562 = vmatprep.subr.bf16.mxu0 0
    %563 = vmatpush1.bf16.msra.mxu0 0
    %564 = vmatprep.subr.bf16.mxu0 0
    %565 = vmatpush1.bf16.msra.mxu0 0
    %566 = vmatprep.subr.bf16.mxu0 0
    %567 = vmatpush1.bf16.msra.mxu0 0
    %568 = vmatprep.subr.bf16.mxu0 0
    %569 = vmatpush1.bf16.msra.mxu0 0
    %570 = vmatprep.subr.bf16.mxu0 0
    %571 = vmatpush1.bf16.msra.mxu0 0
    %572 = vmatprep.subr.bf16.mxu0 0
    %573 = vmatpush1.bf16.msra.mxu0 0
    %574 = vmatprep.subr.bf16.mxu0 0
    %575 = vmatpush1.bf16.msra.mxu0 0
    %576 = vmatprep.subr.bf16.mxu0 0
    %577 = vmatpush1.bf16.msra.mxu0 0
    %578 = vmatprep.subr.bf16.mxu0 0
    %579 = vmatpush1.bf16.msra.mxu0 0
    %580 = vmatprep.subr.bf16.mxu0 0
    %581 = vmatpush1.bf16.msra.mxu0 0
    %582 = vmatprep.subr.bf16.mxu0 0
    %583 = vmatpush1.bf16.msra.mxu0 0
    %584 = vmatprep.subr.bf16.mxu0 0
    %585 = vmatpush1.bf16.msra.mxu0 0
    %586 = vmatprep.subr.bf16.mxu0 0
    %587 = vmatpush1.bf16.msra.mxu0 0
    %588 = vmatprep.subr.bf16.mxu0 0
    %589 = vmatpush1.bf16.msra.mxu0 0
    %590 = vmatprep.mubr.bf16.mxu0 0
    %591 = vmatmul.mubr.bf16.gmra.mrb[0].mxu0 %v541
    %v592 = vpop.f32.mrb[0].mxu0
    %v593 = vadd.f32 0.0, %v592
    %v594 = vpop.f32.mrb[0].mxu0
    %v595 = vpop.f32.mrb[0].mxu0
    %v596 = vadd.f32 0.0, %v595
    %v597 = vpop.f32.mrb[0].mxu0
    %598 = vmatprep.mubr.bf16.mxu0 0
    %599 = vmatmul.mubr.bf16.gmra.mrb[0].mxu0 %v544
    %v600 = vpop.f32.mrb[0].mxu0
    %v601 = vadd.f32 0.0, %v600
    %v602 = vpop.f32.mrb[0].mxu0
    %v603 = vpop.f32.mrb[0].mxu0
    %v604 = vadd.f32 0.0, %v603
    %v605 = vpop.f32.mrb[0].mxu0
    %606 = vmatprep.mubr.bf16.mxu0 0
    %607 = vmatmul.mubr.bf16.gmra.mrb[0].mxu0 %v547
    %v608 = vpop.f32.mrb[0].mxu0
    %v609 = vadd.f32 0.0, %v608
    %v610 = vpop.f32.mrb[0].mxu0
    %v611 = vpop.f32.mrb[0].mxu0
    %v612 = vadd.f32 0.0, %v611
    %v613 = vpop.f32.mrb[0].mxu0
    %614 = vmatprep.mubr.bf16.mxu0 0
    %615 = vmatmul.mubr.bf16.gmra.mrb[0].mxu0 %v550
    %v616 = vpop.f32.mrb[0].mxu0
    %v617 = vadd.f32 0.0, %v616
    %v618 = vpop.f32.mrb[0].mxu0
    %v619 = vpop.f32.mrb[0].mxu0
    %v620 = vadd.f32 0.0, %v619
    %v621 = vpop.f32.mrb[0].mxu0
    %622 = vmatprep.mubr.bf16.mxu0 0
    %623 = vmatmul.mubr.bf16.gmra.mrb[0].mxu0 %v553
    %v624 = vpop.f32.mrb[0].mxu0
    %v625 = vadd.f32 0.0, %v624
    %v626 = vpop.f32.mrb[0].mxu0
    %v627 = vpop.f32.mrb[0].mxu0
    %v628 = vadd.f32 0.0, %v627
    %v629 = vpop.f32.mrb[0].mxu0
    %630 = vmatprep.mubr.bf16.mxu0 0
    %631 = vmatmul.mubr.bf16.gmra.mrb[0].mxu0 %v556
    %v632 = vpop.f32.mrb[0].mxu0
    %v633 = vadd.f32 0.0, %v632
    %v634 = vpop.f32.mrb[0].mxu0
    %v635 = vpop.f32.mrb[0].mxu0
    %v636 = vadd.f32 0.0, %v635
    %v637 = vpop.f32.mrb[0].mxu0
    %638 = vdwg.mxu0
    %v639 = vadd.f32 %v470, %v593
    %v640 = vadd.f32 %v471, %v596
    %v641 = vadd.f32 %v472, %v601
    %v642 = vadd.f32 %v473, %v604
    %v643 = vadd.f32 %v474, %v609
    %v644 = vadd.f32 %v475, %v612
    %v645 = vadd.f32 %v476, %v617
    %v646 = vadd.f32 %v477, %v620
    %v647 = vadd.f32 %v478, %v625
    %v648 = vadd.f32 %v479, %v628
    %v649 = vadd.f32 %v480, %v633
    %v650 = vadd.f32 %v481, %v636
    %v651 = vld [vmem:[%s0 + $0x10] sm:$0xf]
    %v652 = vld [vmem:[%s0 + $0x14] sm:$0xf]
    %v653 = vld [vmem:[%s0 + $0x18] sm:$0xf]
    %v654 = vld [vmem:[%s0 + $0x1c] sm:$0xf]
    %v655 = vld [vmem:[%s0 + $0x20] sm:$0xf]
    %v656 = vld [vmem:[%s0 + $0x24] sm:$0xf]
    %v657 = vld [vmem:[%s0 + $0x28] sm:$0xf]
    %v658 = vld [vmem:[%s0 + $0x2c] sm:$0xf]
    %v659 = vld [vmem:[%s0 + $0x30] sm:$0xf]
    %v660 = vld [vmem:[%s0 + $0x34] sm:$0xf]
    %v661 = vld [vmem:[%s0 + $0x38] sm:$0xf]
    %v662 = vld [vmem:[%s0 + $0x3c] sm:$0xf]
    %v663 = vld [vmem:[%s1 + $0x40] sm:$0xf]
    %v664 = vld [vmem:[%s1 + $0x44] sm:$0xf]
    %v665 = vld [vmem:[%s1 + $0x48] sm:$0xf]
    %v666 = vld [vmem:[%s1 + $0x4c] sm:$0xf]
    %v679 = vunpack.c.l.b16 %v651
    %v680 = vunpack.c.l.b16 %v652
    %v681 = vunpack.c.l.b16 %v653
    %v682 = vunpack.c.l.b16 %v654
    %v683 = vunpack.c.l.b16 %v655
    %v684 = vunpack.c.l.b16 %v656
    %v685 = vunpack.c.l.b16 %v657
    %v686 = vunpack.c.l.b16 %v658
    %v687 = vunpack.c.l.b16 %v659
    %v688 = vunpack.c.l.b16 %v660
    %v689 = vunpack.c.l.b16 %v661
    %v690 = vunpack.c.l.b16 %v662
    %v691 = vpack.c.b16 %v680, %v679
    %v692 = vpack.c.b16 %v682, %v681
    %v693 = vpack.c.b16 %v684, %v683
    %v694 = vpack.c.b16 %v686, %v685
    %v695 = vpack.c.b16 %v688, %v687
    %v696 = vpack.c.b16 %v690, %v689
    %v701 = vunpack.c.l.b16 %v663
    %v702 = vunpack.c.l.b16 %v664
    %v703 = vunpack.c.l.b16 %v665
    %v704 = vunpack.c.l.b16 %v666
    %v705 = vpack.c.b16 %v702, %v701
    %v706 = vpack.c.b16 %v704, %v703
    %v710 = vsel %vm94, %v691, 0
    %v713 = vsel %vm94, %v692, 0
    %v716 = vsel %vm94, %v693, 0
    %v719 = vsel %vm94, %v694, 0
    %v722 = vsel %vm94, %v695, 0
    %v725 = vsel %vm94, %v696, 0
    %727 = vmatprep.subr.bf16.mxu0 0
    %728 = vmatpush1.bf16.msra.mxu0 %v705
    %729 = vmatprep.subr.bf16.mxu0 0
    %730 = vmatpush1.bf16.msra.mxu0 %v706
    %731 = vmatprep.subr.bf16.mxu0 0
    %732 = vmatpush1.bf16.msra.mxu0 0
    %733 = vmatprep.subr.bf16.mxu0 0
    %734 = vmatpush1.bf16.msra.mxu0 0
    %735 = vmatprep.subr.bf16.mxu0 0
    %736 = vmatpush1.bf16.msra.mxu0 0
    %737 = vmatprep.subr.bf16.mxu0 0
    %738 = vmatpush1.bf16.msra.mxu0 0
    %739 = vmatprep.subr.bf16.mxu0 0
    %740 = vmatpush1.bf16.msra.mxu0 0
    %741 = vmatprep.subr.bf16.mxu0 0
    %742 = vmatpush1.bf16.msra.mxu0 0
    %743 = vmatprep.subr.bf16.mxu0 0
    %744 = vmatpush1.bf16.msra.mxu0 0
    %745 = vmatprep.subr.bf16.mxu0 0
    %746 = vmatpush1.bf16.msra.mxu0 0
    %747 = vmatprep.subr.bf16.mxu0 0
    %748 = vmatpush1.bf16.msra.mxu0 0
    %749 = vmatprep.subr.bf16.mxu0 0
    %750 = vmatpush1.bf16.msra.mxu0 0
    %751 = vmatprep.subr.bf16.mxu0 0
    %752 = vmatpush1.bf16.msra.mxu0 0
    %753 = vmatprep.subr.bf16.mxu0 0
    %754 = vmatpush1.bf16.msra.mxu0 0
    %755 = vmatprep.subr.bf16.mxu0 0
    %756 = vmatpush1.bf16.msra.mxu0 0
    %757 = vmatprep.subr.bf16.mxu0 0
    %758 = vmatpush1.bf16.msra.mxu0 0
    %759 = vmatprep.mubr.bf16.mxu0 0
    %760 = vmatmul.mubr.bf16.gmra.mrb[0].mxu0 %v710
    %v761 = vpop.f32.mrb[0].mxu0
    %v762 = vadd.f32 0.0, %v761
    %v763 = vpop.f32.mrb[0].mxu0
    %v764 = vpop.f32.mrb[0].mxu0
    %v765 = vadd.f32 0.0, %v764
    %v766 = vpop.f32.mrb[0].mxu0
    %767 = vmatprep.mubr.bf16.mxu0 0
    %768 = vmatmul.mubr.bf16.gmra.mrb[0].mxu0 %v713
    %v769 = vpop.f32.mrb[0].mxu0
    %v770 = vadd.f32 0.0, %v769
    %v771 = vpop.f32.mrb[0].mxu0
    %v772 = vpop.f32.mrb[0].mxu0
    %v773 = vadd.f32 0.0, %v772
    %v774 = vpop.f32.mrb[0].mxu0
    %775 = vmatprep.mubr.bf16.mxu0 0
    %776 = vmatmul.mubr.bf16.gmra.mrb[0].mxu0 %v716
    %v777 = vpop.f32.mrb[0].mxu0
    %v778 = vadd.f32 0.0, %v777
    %v779 = vpop.f32.mrb[0].mxu0
    %v780 = vpop.f32.mrb[0].mxu0
    %v781 = vadd.f32 0.0, %v780
    %v782 = vpop.f32.mrb[0].mxu0
    %783 = vmatprep.mubr.bf16.mxu0 0
    %784 = vmatmul.mubr.bf16.gmra.mrb[0].mxu0 %v719
    %v785 = vpop.f32.mrb[0].mxu0
    %v786 = vadd.f32 0.0, %v785
    %v787 = vpop.f32.mrb[0].mxu0
    %v788 = vpop.f32.mrb[0].mxu0
    %v789 = vadd.f32 0.0, %v788
    %v790 = vpop.f32.mrb[0].mxu0
    %791 = vmatprep.mubr.bf16.mxu0 0
    %792 = vmatmul.mubr.bf16.gmra.mrb[0].mxu0 %v722
    %v793 = vpop.f32.mrb[0].mxu0
    %v794 = vadd.f32 0.0, %v793
    %v795 = vpop.f32.mrb[0].mxu0
    %v796 = vpop.f32.mrb[0].mxu0
    %v797 = vadd.f32 0.0, %v796
    %v798 = vpop.f32.mrb[0].mxu0
    %799 = vmatprep.mubr.bf16.mxu0 0
    %800 = vmatmul.mubr.bf16.gmra.mrb[0].mxu0 %v725
    %v801 = vpop.f32.mrb[0].mxu0
    %v802 = vadd.f32 0.0, %v801
    %v803 = vpop.f32.mrb[0].mxu0
    %v804 = vpop.f32.mrb[0].mxu0
    %v805 = vadd.f32 0.0, %v804
    %v806 = vpop.f32.mrb[0].mxu0
    %807 = vdwg.mxu0
    %v808 = vadd.f32 %v639, %v762
    %v809 = vadd.f32 %v640, %v765
    %v810 = vadd.f32 %v641, %v770
    %v811 = vadd.f32 %v642, %v773
    %v812 = vadd.f32 %v643, %v778
    %v813 = vadd.f32 %v644, %v781
    %v814 = vadd.f32 %v645, %v786
    %v815 = vadd.f32 %v646, %v789
    %v816 = vadd.f32 %v647, %v794
    %v817 = vadd.f32 %v648, %v797
    %v818 = vadd.f32 %v649, %v802
    %v819 = vadd.f32 %v650, %v805
    %v820 = vld [vmem:[%s2] sm:$0x1]
    %v822 = vlaneseq
    %v823 = vshrl.u32 %v822, 7
    %v824 = vsub.s32 0, %v823
    %v825 = vrot.slane %v820, %v824
    %v827 = vadd.f32 %v808, %v825
    %v828 = vadd.f32 %v809, %v825
    %v829 = vadd.f32 %v810, %v825
    %v830 = vadd.f32 %v811, %v825
    %v831 = vadd.f32 %v812, %v825
    %v832 = vadd.f32 %v813, %v825
    %v833 = vadd.f32 %v814, %v825
    %v834 = vadd.f32 %v815, %v825
    %v835 = vadd.f32 %v816, %v825
    %v836 = vadd.f32 %v817, %v825
    %v837 = vadd.f32 %v818, %v825
    %v838 = vadd.f32 %v819, %v825
    %v839 = vmax.f32 %v827, 0.0
    %v840 = vmax.f32 %v828, 0.0
    %v841 = vmax.f32 %v829, 0.0
    %v842 = vmax.f32 %v830, 0.0
    %v843 = vmax.f32 %v831, 0.0
    %v844 = vmax.f32 %v832, 0.0
    %v845 = vmax.f32 %v833, 0.0
    %v846 = vmax.f32 %v834, 0.0
    %v847 = vmax.f32 %v835, 0.0
    %v848 = vmax.f32 %v836, 0.0
    %v849 = vmax.f32 %v837, 0.0
    %v850 = vmax.f32 %v838, 0.0
    %v851 = vmax.f32 %v839, %v840
    %v852 = vmax.f32 %v843, %v844
    %v853 = vmax.f32 %v847, %v848
    %v854 = vmax.f32 %v851, %v841
    %v855 = vmax.f32 %v852, %v845
    %v856 = vmax.f32 %v853, %v849
    %v857 = vmax.f32 %v854, %v842
    %v858 = vmax.f32 %v855, %v846
    %v859 = vmax.f32 %v856, %v850
    %v860 = vpack.c.bf16 %v858, %v857
    %v861 = vpack.c.bf16 %v859, %v859
    %v862 = vld [vmem:[%s3] sm:$0xf]
    %v863 = vld [vmem:[%s3 + $0x4] sm:$0xf]
    %v864 = vld [vmem:[%s5] sm:$0x1]
    %v866 = vlaneseq
    %v867 = vshrl.u32 %v866, 7
    %v868 = vsub.s32 0, %v867
    %v869 = vrot.slane %v864, %v868
    %v873 = vunpack.c.l.b16 %v862
    %v874 = vunpack.c.l.b16 %v863
    %v875 = vpack.c.b16 %v874, %v873
    %vm877 = vcmask 130048
    %v879 = vsel %vm877, %v860, 0
    %v882 = vsel %vm877, %v861, 0
    %884 = vmatprep.subr.bf16.mxu0 0
    %885 = vmatpush1.bf16.msra.mxu0 %v875
    %886 = vmatprep.subr.bf16.mxu0 0
    %887 = vmatpush1.bf16.msra.mxu0 0
    %888 = vmatprep.subr.bf16.mxu0 0
    %889 = vmatpush1.bf16.msra.mxu0 0
    %890 = vmatprep.subr.bf16.mxu0 0
    %891 = vmatpush1.bf16.msra.mxu0 0
    %892 = vmatprep.subr.bf16.mxu0 0
    %893 = vmatpush1.bf16.msra.mxu0 0
    %894 = vmatprep.subr.bf16.mxu0 0
    %895 = vmatpush1.bf16.msra.mxu0 0
    %896 = vmatprep.subr.bf16.mxu0 0
    %897 = vmatpush1.bf16.msra.mxu0 0
    %898 = vmatprep.subr.bf16.mxu0 0
    %899 = vmatpush1.bf16.msra.mxu0 0
    %900 = vmatprep.subr.bf16.mxu0 0
    %901 = vmatpush1.bf16.msra.mxu0 0
    %902 = vmatprep.subr.bf16.mxu0 0
    %903 = vmatpush1.bf16.msra.mxu0 0
    %904 = vmatprep.subr.bf16.mxu0 0
    %905 = vmatpush1.bf16.msra.mxu0 0
    %906 = vmatprep.subr.bf16.mxu0 0
    %907 = vmatpush1.bf16.msra.mxu0 0
    %908 = vmatprep.subr.bf16.mxu0 0
    %909 = vmatpush1.bf16.msra.mxu0 0
    %910 = vmatprep.subr.bf16.mxu0 0
    %911 = vmatpush1.bf16.msra.mxu0 0
    %912 = vmatprep.subr.bf16.mxu0 0
    %913 = vmatpush1.bf16.msra.mxu0 0
    %914 = vmatprep.subr.bf16.mxu0 0
    %915 = vmatpush1.bf16.msra.mxu0 0
    %916 = vmatprep.mubr.bf16.mxu0 0
    %917 = vmatmul.mubr.bf16.gmra.mrb[0].mxu0 %v879
    %v918 = vpop.f32.mrb[0].mxu0
    %v919 = vadd.f32 %v869, %v918
    %v920 = vpop.f32.mrb[0].mxu0
    %v921 = vpop.f32.mrb[0].mxu0
    %v922 = vadd.f32 %v869, %v921
    %v923 = vpop.f32.mrb[0].mxu0
    %924 = vmatprep.mubr.bf16.mxu0 0
    %925 = vmatmul.mubr.bf16.gmra.mrb[0].mxu0 %v882
    %v926 = vpop.f32.mrb[0].mxu0
    %v927 = vadd.f32 %v869, %v926
    %v928 = vpop.f32.mrb[0].mxu0
    %v929 = vpop.f32.mrb[0].mxu0
    %v930 = vpop.f32.mrb[0].mxu0
    %931 = vdwg.mxu0
    %932 = vst [vmem:[#allocation2] sm:$0xff] %v919
    %933 = vst [vmem:[#allocation2 + $0x8] sm:$0xff] %v922
    %934 = vst [vmem:[#allocation2 + $0x10] sm:$0xff] %v927
    %v935 = vld [vmem:[%s4] sm:$0xff]
    %v936 = vld [vmem:[%s4 + $0x8] sm:$0xff]
    %v937 = vld [vmem:[%s4 + $0x10] sm:$0xff]
    %v938 = vld [vmem:[%s4 + $0x18] sm:$0xff]
    %v939 = vld [vmem:[#allocation2] sm:$0xff]
    %v941 = vsel %vm94, 0.0, 0
    %943 = vmatprep.subr.mxu0 0.0
    %944 = vmatpush1.msra.mxu0 %v935
    %945 = vmatprep.subr.mxu0 0.0
    %946 = vmatpush1.msra.mxu0 %v936
    %947 = vmatprep.subr.mxu0 0.0
    %948 = vmatpush1.msra.mxu0 %v937
    %949 = vmatprep.subr.mxu0 0.0
    %950 = vmatpush1.msra.mxu0 %v938
    %951 = vmatprep.subr.mxu0 0.0
    %952 = vmatpush1.msra.mxu0 0.0
    %953 = vmatprep.subr.mxu0 0.0
    %954 = vmatpush1.msra.mxu0 0.0
    %955 = vmatprep.subr.mxu0 0.0
    %956 = vmatpush1.msra.mxu0 0.0
    %957 = vmatprep.subr.mxu0 0.0
    %958 = vmatpush1.msra.mxu0 0.0
    %959 = vmatprep.subr.mxu0 0.0
    %960 = vmatpush1.msra.mxu0 0.0
    %961 = vmatprep.subr.mxu0 0.0
    %962 = vmatpush1.msra.mxu0 0.0
    %963 = vmatprep.subr.mxu0 0.0
    %964 = vmatpush1.msra.mxu0 0.0
    %965 = vmatprep.subr.mxu0 0.0
    %966 = vmatpush1.msra.mxu0 0.0
    %967 = vmatprep.subr.mxu0 0.0
    %968 = vmatpush1.msra.mxu0 0.0
    %969 = vmatprep.subr.mxu0 0.0
    %970 = vmatpush1.msra.mxu0 0.0
    %971 = vmatprep.subr.mxu0 0.0
    %972 = vmatpush1.msra.mxu0 0.0
    %973 = vmatprep.subr.mxu0 0.0
    %974 = vmatpush1.msra.mxu0 0.0
    %975 = vmatprep.subr.mxu0 0.0
    %976 = vmatpush1.msra.mxu0 0.0
    %977 = vmatprep.subr.mxu0 0.0
    %978 = vmatpush1.msra.mxu0 0.0
    %979 = vmatprep.subr.mxu0 0.0
    %980 = vmatpush1.msra.mxu0 0.0
    %981 = vmatprep.subr.mxu0 0.0
    %982 = vmatpush1.msra.mxu0 0.0
    %983 = vmatprep.subr.mxu0 0.0
    %984 = vmatpush1.msra.mxu0 0.0
    %985 = vmatprep.subr.mxu0 0.0
    %986 = vmatpush1.msra.mxu0 0.0
    %987 = vmatprep.subr.mxu0 0.0
    %988 = vmatpush1.msra.mxu0 0.0
    %989 = vmatprep.subr.mxu0 0.0
    %990 = vmatpush1.msra.mxu0 0.0
    %991 = vmatprep.subr.mxu0 0.0
    %992 = vmatpush1.msra.mxu0 0.0
    %993 = vmatprep.subr.mxu0 0.0
    %994 = vmatpush1.msra.mxu0 0.0
    %995 = vmatprep.subr.mxu0 0.0
    %996 = vmatpush1.msra.mxu0 0.0
    %997 = vmatprep.subr.mxu0 0.0
    %998 = vmatpush1.msra.mxu0 0.0
    %999 = vmatprep.subr.mxu0 0.0
    %1000 = vmatpush1.msra.mxu0 0.0
    %1001 = vmatprep.subr.mxu0 0.0
    %1002 = vmatpush1.msra.mxu0 0.0
    %1003 = vmatprep.subr.mxu0 0.0
    %1004 = vmatpush1.msra.mxu0 0.0
    %1005 = vmatprep.subr.mxu0 0.0
    %1006 = vmatpush1.msra.mxu0 0.0
    %1007 = vmatprep.mubr.f32.mxu0 0.0
    %1008 = vmatmul.mubr.f32.gmra.mrb[0].mxu0 %v941
    %v1009 = vpop.f32.mrb[0].mxu0
    %v1010 = vadd.f32 0.0, %v1009
    %v1011 = vpop.f32.mrb[0].mxu0
    %1012 = vdwg.mxu0
    %v1013 = vadd.f32 %v939, %v1010
    %v1014 = vxor.u32 %v1013, 2147483648
    %v1015 = vmul.f32 %v1014, 1.442695
    %v1016 = vpow.pop %v1015
    %v1017 = vadd.f32 %v1016, 1.0
    %v1018 = vrcp.pop %v1017
    %v1019 = vmul.f32 1.0, %v1018
    %v1020 = vtanh.pop %v1013
    %v1021 = vmul.f32 %v1019, 0.0
    %1023 = vrot.lane.b32.xlu0 %v1020, 32
    %v1024 = vpop.permute.xlu0 %1023
    %v1026 = vmul.f32 %v1019, %v1024
    %1028 = vrot.lane.b32.xlu0 %v1026, 32
    %v1029 = vpop.permute.xlu0 %1028
    %v1031 = vadd.f32 %v1021, %v1029
    %v1032 = vtanh.pop %v1031
    %1034 = vrot.lane.b32.xlu0 %v1032, 32
    %v1035 = vpop.permute.xlu0 %1034
    %v1037 = vmul.f32 %v1019, %v1035
    %s1038 = scalar_lea.vmem [#allocation2], 8
    %v1039 = vld [vmem:[%s1038] sm:$0xff]
    %1041 = vrot.lane.b32.xlu0 %v1037, 64
    %v1042 = vpop.permute.xlu0 %1041
    %v1043 = vsel %vm94, %v1042, 0
    %1045 = vmatprep.subr.mxu0 0.0
    %1046 = vmatpush1.msra.mxu0 %v935
    %1047 = vmatprep.subr.mxu0 0.0
    %1048 = vmatpush1.msra.mxu0 %v936
    %1049 = vmatprep.subr.mxu0 0.0
    %1050 = vmatpush1.msra.mxu0 %v937
    %1051 = vmatprep.subr.mxu0 0.0
    %1052 = vmatpush1.msra.mxu0 %v938
    %1053 = vmatprep.subr.mxu0 0.0
    %1054 = vmatpush1.msra.mxu0 0.0
    %1055 = vmatprep.subr.mxu0 0.0
    %1056 = vmatpush1.msra.mxu0 0.0
    %1057 = vmatprep.subr.mxu0 0.0
    %1058 = vmatpush1.msra.mxu0 0.0
    %1059 = vmatprep.subr.mxu0 0.0
    %1060 = vmatpush1.msra.mxu0 0.0
    %1061 = vmatprep.subr.mxu0 0.0
    %1062 = vmatpush1.msra.mxu0 0.0
    %1063 = vmatprep.subr.mxu0 0.0
    %1064 = vmatpush1.msra.mxu0 0.0
    %1065 = vmatprep.subr.mxu0 0.0
    %1066 = vmatpush1.msra.mxu0 0.0
    %1067 = vmatprep.subr.mxu0 0.0
    %1068 = vmatpush1.msra.mxu0 0.0
    %1069 = vmatprep.subr.mxu0 0.0
    %1070 = vmatpush1.msra.mxu0 0.0
    %1071 = vmatprep.subr.mxu0 0.0
    %1072 = vmatpush1.msra.mxu0 0.0
    %1073 = vmatprep.subr.mxu0 0.0
    %1074 = vmatpush1.msra.mxu0 0.0
    %1075 = vmatprep.subr.mxu0 0.0
    %1076 = vmatpush1.msra.mxu0 0.0
    %1077 = vmatprep.subr.mxu0 0.0
    %1078 = vmatpush1.msra.mxu0 0.0
    %1079 = vmatprep.subr.mxu0 0.0
    %1080 = vmatpush1.msra.mxu0 0.0
    %1081 = vmatprep.subr.mxu0 0.0
    %1082 = vmatpush1.msra.mxu0 0.0
    %1083 = vmatprep.subr.mxu0 0.0
    %1084 = vmatpush1.msra.mxu0 0.0
    %1085 = vmatprep.subr.mxu0 0.0
    %1086 = vmatpush1.msra.mxu0 0.0
    %1087 = vmatprep.subr.mxu0 0.0
    %1088 = vmatpush1.msra.mxu0 0.0
    %1089 = vmatprep.subr.mxu0 0.0
    %1090 = vmatpush1.msra.mxu0 0.0
    %1091 = vmatprep.subr.mxu0 0.0
    %1092 = vmatpush1.msra.mxu0 0.0
    %1093 = vmatprep.subr.mxu0 0.0
    %1094 = vmatpush1.msra.mxu0 0.0
    %1095 = vmatprep.subr.mxu0 0.0
    %1096 = vmatpush1.msra.mxu0 0.0
    %1097 = vmatprep.subr.mxu0 0.0
    %1098 = vmatpush1.msra.mxu0 0.0
    %1099 = vmatprep.subr.mxu0 0.0
    %1100 = vmatpush1.msra.mxu0 0.0
    %1101 = vmatprep.subr.mxu0 0.0
    %1102 = vmatpush1.msra.mxu0 0.0
    %1103 = vmatprep.subr.mxu0 0.0
    %1104 = vmatpush1.msra.mxu0 0.0
    %1105 = vmatprep.subr.mxu0 0.0
    %1106 = vmatpush1.msra.mxu0 0.0
    %1107 = vmatprep.subr.mxu0 0.0
    %1108 = vmatpush1.msra.mxu0 0.0
    %1109 = vmatprep.mubr.f32.mxu0 0.0
    %1110 = vmatmul.mubr.f32.gmra.mrb[0].mxu0 %v1043
    %v1111 = vpop.f32.mrb[0].mxu0
    %v1112 = vadd.f32 0.0, %v1111
    %v1113 = vpop.f32.mrb[0].mxu0
    %1114 = vdwg.mxu0
    %v1115 = vadd.f32 %v1039, %v1112
    %v1116 = vxor.u32 %v1115, 2147483648
    %v1117 = vmul.f32 %v1116, 1.442695
    %v1118 = vpow.pop %v1117
    %v1119 = vadd.f32 %v1118, 1.0
    %v1120 = vrcp.pop %v1119
    %v1121 = vmul.f32 1.0, %v1120
    %v1122 = vtanh.pop %v1115
    %v1123 = vmul.f32 %v1121, %v1031
    %1125 = vrot.lane.b32.xlu0 %v1122, 32
    %v1126 = vpop.permute.xlu0 %1125
    %v1128 = vmul.f32 %v1121, %v1126
    %1130 = vrot.lane.b32.xlu0 %v1128, 32
    %v1131 = vpop.permute.xlu0 %1130
    %v1133 = vadd.f32 %v1123, %v1131
    %v1134 = vtanh.pop %v1133
    %1136 = vrot.lane.b32.xlu0 %v1134, 32
    %v1137 = vpop.permute.xlu0 %1136
    %v1139 = vmul.f32 %v1121, %v1137
    %s1140 = scalar_lea.vmem [#allocation2], 16
    %v1141 = vld [vmem:[%s1140] sm:$0xff]
    %1143 = vrot.lane.b32.xlu0 %v1139, 64
    %v1144 = vpop.permute.xlu0 %1143
    %v1145 = vsel %vm94, %v1144, 0
    %1147 = vmatprep.subr.mxu0 0.0
    %1148 = vmatpush1.msra.mxu0 %v935
    %1149 = vmatprep.subr.mxu0 0.0
    %1150 = vmatpush1.msra.mxu0 %v936
    %1151 = vmatprep.subr.mxu0 0.0
    %1152 = vmatpush1.msra.mxu0 %v937
    %1153 = vmatprep.subr.mxu0 0.0
    %1154 = vmatpush1.msra.mxu0 %v938
    %1155 = vmatprep.subr.mxu0 0.0
    %1156 = vmatpush1.msra.mxu0 0.0
    %1157 = vmatprep.subr.mxu0 0.0
    %1158 = vmatpush1.msra.mxu0 0.0
    %1159 = vmatprep.subr.mxu0 0.0
    %1160 = vmatpush1.msra.mxu0 0.0
    %1161 = vmatprep.subr.mxu0 0.0
    %1162 = vmatpush1.msra.mxu0 0.0
    %1163 = vmatprep.subr.mxu0 0.0
    %1164 = vmatpush1.msra.mxu0 0.0
    %1165 = vmatprep.subr.mxu0 0.0
    %1166 = vmatpush1.msra.mxu0 0.0
    %1167 = vmatprep.subr.mxu0 0.0
    %1168 = vmatpush1.msra.mxu0 0.0
    %1169 = vmatprep.subr.mxu0 0.0
    %1170 = vmatpush1.msra.mxu0 0.0
    %1171 = vmatprep.subr.mxu0 0.0
    %1172 = vmatpush1.msra.mxu0 0.0
    %1173 = vmatprep.subr.mxu0 0.0
    %1174 = vmatpush1.msra.mxu0 0.0
    %1175 = vmatprep.subr.mxu0 0.0
    %1176 = vmatpush1.msra.mxu0 0.0
    %1177 = vmatprep.subr.mxu0 0.0
    %1178 = vmatpush1.msra.mxu0 0.0
    %1179 = vmatprep.subr.mxu0 0.0
    %1180 = vmatpush1.msra.mxu0 0.0
    %1181 = vmatprep.subr.mxu0 0.0
    %1182 = vmatpush1.msra.mxu0 0.0
    %1183 = vmatprep.subr.mxu0 0.0
    %1184 = vmatpush1.msra.mxu0 0.0
    %1185 = vmatprep.subr.mxu0 0.0
    %1186 = vmatpush1.msra.mxu0 0.0
    %1187 = vmatprep.subr.mxu0 0.0
    %1188 = vmatpush1.msra.mxu0 0.0
    %1189 = vmatprep.subr.mxu0 0.0
    %1190 = vmatpush1.msra.mxu0 0.0
    %1191 = vmatprep.subr.mxu0 0.0
    %1192 = vmatpush1.msra.mxu0 0.0
    %1193 = vmatprep.subr.mxu0 0.0
    %1194 = vmatpush1.msra.mxu0 0.0
    %1195 = vmatprep.subr.mxu0 0.0
    %1196 = vmatpush1.msra.mxu0 0.0
    %1197 = vmatprep.subr.mxu0 0.0
    %1198 = vmatpush1.msra.mxu0 0.0
    %1199 = vmatprep.subr.mxu0 0.0
    %1200 = vmatpush1.msra.mxu0 0.0
    %1201 = vmatprep.subr.mxu0 0.0
    %1202 = vmatpush1.msra.mxu0 0.0
    %1203 = vmatprep.subr.mxu0 0.0
    %1204 = vmatpush1.msra.mxu0 0.0
    %1205 = vmatprep.subr.mxu0 0.0
    %1206 = vmatpush1.msra.mxu0 0.0
    %1207 = vmatprep.subr.mxu0 0.0
    %1208 = vmatpush1.msra.mxu0 0.0
    %1209 = vmatprep.subr.mxu0 0.0
    %1210 = vmatpush1.msra.mxu0 0.0
    %1211 = vmatprep.mubr.f32.mxu0 0.0
    %1212 = vmatmul.mubr.f32.gmra.mrb[0].mxu0 %v1145
    %v1213 = vpop.f32.mrb[0].mxu0
    %v1214 = vadd.f32 0.0, %v1213
    %v1215 = vpop.f32.mrb[0].mxu0
    %1216 = vdwg.mxu0
    %v1217 = vadd.f32 %v1141, %v1214
    %v1218 = vxor.u32 %v1217, 2147483648
    %v1219 = vmul.f32 %v1218, 1.442695
    %v1220 = vpow.pop %v1219
    %v1221 = vadd.f32 %v1220, 1.0
    %v1222 = vrcp.pop %v1221
    %v1223 = vmul.f32 1.0, %v1222
    %v1224 = vtanh.pop %v1217
    %v1225 = vmul.f32 %v1223, %v1133
    %1227 = vrot.lane.b32.xlu0 %v1224, 32
    %v1228 = vpop.permute.xlu0 %1227
    %v1230 = vmul.f32 %v1223, %v1228
    %1232 = vrot.lane.b32.xlu0 %v1230, 32
    %v1233 = vpop.permute.xlu0 %1232
    %v1235 = vadd.f32 %v1225, %v1233
    %v1236 = vtanh.pop %v1235
    %1238 = vrot.lane.b32.xlu0 %v1236, 32
    %v1239 = vpop.permute.xlu0 %1238
    %v1241 = vmul.f32 %v1223, %v1239
    %v1242 = vld [vmem:[%s6] sm:$0xff]
    %v1243 = vld [vmem:[%s6 + $0x8] sm:$0xff]
    %v1244 = vld [vmem:[%s6 + $0x10] sm:$0xff]
    %v1245 = vld [vmem:[%s6 + $0x18] sm:$0xff]
    %v1246 = vld [vmem:[%s7] sm:$0x1]
    %v1248 = vlaneseq
    %v1249 = vshrl.u32 %v1248, 7
    %v1250 = vsub.s32 0, %v1249
    %v1251 = vrot.slane %v1246, %v1250
    %1254 = vrot.lane.b32.xlu0 %v1241, 64
    %v1255 = vpop.permute.xlu0 %1254
    %v1256 = vsel %vm94, %v1255, 0
    %1258 = vmatprep.subr.mxu0 0.0
    %1259 = vmatpush1.msra.mxu0 %v1242
    %1260 = vmatprep.subr.mxu0 0.0
    %1261 = vmatpush1.msra.mxu0 %v1243
    %1262 = vmatprep.subr.mxu0 0.0
    %1263 = vmatpush1.msra.mxu0 %v1244
    %1264 = vmatprep.subr.mxu0 0.0
    %1265 = vmatpush1.msra.mxu0 %v1245
    %1266 = vmatprep.subr.mxu0 0.0
    %1267 = vmatpush1.msra.mxu0 0.0
    %1268 = vmatprep.subr.mxu0 0.0
    %1269 = vmatpush1.msra.mxu0 0.0
    %1270 = vmatprep.subr.mxu0 0.0
    %1271 = vmatpush1.msra.mxu0 0.0
    %1272 = vmatprep.subr.mxu0 0.0
    %1273 = vmatpush1.msra.mxu0 0.0
    %1274 = vmatprep.subr.mxu0 0.0
    %1275 = vmatpush1.msra.mxu0 0.0
    %1276 = vmatprep.subr.mxu0 0.0
    %1277 = vmatpush1.msra.mxu0 0.0
    %1278 = vmatprep.subr.mxu0 0.0
    %1279 = vmatpush1.msra.mxu0 0.0
    %1280 = vmatprep.subr.mxu0 0.0
    %1281 = vmatpush1.msra.mxu0 0.0
    %1282 = vmatprep.subr.mxu0 0.0
    %1283 = vmatpush1.msra.mxu0 0.0
    %1284 = vmatprep.subr.mxu0 0.0
    %1285 = vmatpush1.msra.mxu0 0.0
    %1286 = vmatprep.subr.mxu0 0.0
    %1287 = vmatpush1.msra.mxu0 0.0
    %1288 = vmatprep.subr.mxu0 0.0
    %1289 = vmatpush1.msra.mxu0 0.0
    %1290 = vmatprep.subr.mxu0 0.0
    %1291 = vmatpush1.msra.mxu0 0.0
    %1292 = vmatprep.subr.mxu0 0.0
    %1293 = vmatpush1.msra.mxu0 0.0
    %1294 = vmatprep.subr.mxu0 0.0
    %1295 = vmatpush1.msra.mxu0 0.0
    %1296 = vmatprep.subr.mxu0 0.0
    %1297 = vmatpush1.msra.mxu0 0.0
    %1298 = vmatprep.subr.mxu0 0.0
    %1299 = vmatpush1.msra.mxu0 0.0
    %1300 = vmatprep.subr.mxu0 0.0
    %1301 = vmatpush1.msra.mxu0 0.0
    %1302 = vmatprep.subr.mxu0 0.0
    %1303 = vmatpush1.msra.mxu0 0.0
    %1304 = vmatprep.subr.mxu0 0.0
    %1305 = vmatpush1.msra.mxu0 0.0
    %1306 = vmatprep.subr.mxu0 0.0
    %1307 = vmatpush1.msra.mxu0 0.0
    %1308 = vmatprep.subr.mxu0 0.0
    %1309 = vmatpush1.msra.mxu0 0.0
    %1310 = vmatprep.subr.mxu0 0.0
    %1311 = vmatpush1.msra.mxu0 0.0
    %1312 = vmatprep.subr.mxu0 0.0
    %1313 = vmatpush1.msra.mxu0 0.0
    %1314 = vmatprep.subr.mxu0 0.0
    %1315 = vmatpush1.msra.mxu0 0.0
    %1316 = vmatprep.subr.mxu0 0.0
    %1317 = vmatpush1.msra.mxu0 0.0
    %1318 = vmatprep.subr.mxu0 0.0
    %1319 = vmatpush1.msra.mxu0 0.0
    %1320 = vmatprep.subr.mxu0 0.0
    %1321 = vmatpush1.msra.mxu0 0.0
    %1322 = vmatprep.mubr.f32.mxu0 0.0
    %1323 = vmatmul.mubr.f32.gmra.mrb[0].mxu0 %v1256
    %v1324 = vpop.f32.mrb[0].mxu0
    %v1325 = vadd.f32 %v1251, %v1324
    %v1326 = vpop.f32.mrb[0].mxu0
    %1327 = vdwg.mxu0
    %1328 = vst [vmem:[#allocation3] sm:$0xff] %v1325
    // Predicated region
    $region34: #{tpu_custom_call.1} parent=1 // pred_check
      _
    $region35: #{tpu_custom_call.1} parent=1 // pred_check_branch
      %1330 = sbr.rel (0) target = $region37
    $region36: #{tpu_custom_call.1} parent=1 // pred_region
      %s1332 = ssub.s32 128, 128
      %1333 = vsyncadd [#allocation4], %s1332
      %s1335 = sshll.u32 [#allocation3], 4
      %s1336 = int_to_ptr.vmem [resolvable:$true] %s1335
      %1338 = dma.vmem_to_hbm [thread:$0]  %s1336, 128, %s8, [#allocation4]
    $region37: #{tpu_custom_call.1} parent=1 // pred_fallthru
      _
    // Predicated region
    $region38: #{tpu_custom_call.1} parent=1 // pred_check
      _
    $region39: #{tpu_custom_call.1} parent=1 // pred_check_branch
      %1340 = sbr.rel (0) target = $region41
    $region40: #{tpu_custom_call.1} parent=1 // pred_region
      %1341 = dma.done [#allocation4], 128
    $region41: #{tpu_custom_call.1} parent=1 // pred_fallthru
      _
    %1342 = vsyncpa [#allocation4], 1

</llo_original>
